<compile_context>
chip_gen: v7x
topology: tpu7x:2x2x1
jax: 0.10.0
libtpu: 0.0.40
codegen_flags: <defaults>
</compile_context>

<pallas_src>
import functools

import jax
import jax.numpy as jnp
from jax.experimental import pallas as pl
from jax.experimental.pallas import tpu as pltpu


# ----------------------------- small helpers --------------------------------

def _is_pow2(v):
    return v > 0 and (v & (v - 1)) == 0


def _mod(x, v):
    # integer modulo by a static value; bitwise-and when v is a power of two
    return (x & (v - 1)) if _is_pow2(v) else (x % v)


def _div(x, v):
    # integer divide by a static value; shift when v is a power of two
    return (x >> (v.bit_length() - 1)) if _is_pow2(v) else (x // v)


# ----------------------------- fused kernel ---------------------------------

def _peipnet_kernel(mask_ref, real_ref, w1_ref, b1_ref, w2_ref, b2_ref,
                    masked_ref, out_ref, *, H, W, bb):
    hw = H * W
    n = bb * hw                           # batch folded into the lane axis

    m = mask_ref[...]                     # (1, n) f32
    real = real_ref[...]                  # (3, n) f32

    # maskedImage = realImage * (1 - mask)
    masked = real * (1.0 - m)
    masked_ref[...] = masked              # lane-dense store

    # Per-lane (image-local) row/col indices, computed once (bitwise ops for
    # power-of-two H/W).  Used to build the 8 tap-validity masks: pltpu.roll
    # wraps across row / image boundaries, which 'SAME' zero padding must not.
    li = jax.lax.broadcasted_iota(jnp.int32, (1, n), 1)
    col = _mod(li, W)
    row = _mod(_div(li, W), H)
    col_ok = {-1: col >= 1, 0: None, 1: col <= W - 2}
    row_ok = {-1: row >= 1, 0: None, 1: row <= H - 2}

    def _tap_mask(ry, rx):
        r, c = row_ok[ry], col_ok[rx]
        if r is None:
            return c
        if c is None:
            return r
        return jnp.logical_and(r, c)

    tap_masks = [_tap_mask(t // 3 - 1, t % 3 - 1) for t in range(9)]

    def _conv3x3(x, w_ref, b_ref):
        """3x3 'SAME' conv on a (Cin, n) slab as ONE stacked matmul.

        w_ref : (Cout, 9*Cin) bf16, column = (ky*3+kx)*Cin + cin.
        b_ref : (Cout, 1) f32.
        """
        slabs = []
        for t in range(9):
            ry, rx = t // 3 - 1, t % 3 - 1
            off = ry * W + rx             # source lane = dest lane + off
            xs = x if off == 0 else pltpu.roll(x, (-off) % n, axis=1)
            mk = tap_masks[t]
            if mk is not None:
                xs = jnp.where(mk, xs, 0.0)
            slabs.append(xs)
        xk = jnp.concatenate(slabs, axis=0).astype(jnp.bfloat16)  # (9*Cin, n)
        return jnp.dot(w_ref[...], xk,
                       preferred_element_type=jnp.float32) + b_ref[...]

    # Generator stand-in: conv3x3 -> InstanceNorm -> ReLU -> conv3x3 -> tanh.
    x1 = jnp.concatenate([masked, m], axis=0)        # (4, n) f32
    h = _conv3x3(x1, w1_ref, b1_ref)                 # (Ch, n) f32

    # InstanceNorm2d (affine=False, eps=1e-5, biased var) + ReLU, per image,
    # single-pass statistics (sum and sum-of-squares).
    inv_hw = 1.0 / hw
    parts = []
    for b in range(bb):                              # static, lane-aligned slices
        hb = h[:, b * hw:(b + 1) * hw]
        s1 = jnp.sum(hb, axis=1, keepdims=True)
        s2 = jnp.sum(hb * hb, axis=1, keepdims=True)
        mu = s1 * inv_hw
        var = s2 * inv_hw - mu * mu
        parts.append(jnp.maximum((hb - mu) * jax.lax.rsqrt(var + 1e-5), 0.0))
    hn = parts[0] if bb == 1 else jnp.concatenate(parts, axis=1)

    gen = _conv3x3(hn, w2_ref, b2_ref)               # (3, n) f32

    # outputImage = maskedImage + tanh(gen) * mask
    out_ref[...] = masked + jnp.tanh(gen) * m


# ----------------------------- wrappers --------------------------------------

def init_params(key, hidden=32):
    k1, k2 = jax.random.split(key)
    gain = 0.02  # initType='normal'
    return {
        "w1": gain * jax.random.normal(k1, (hidden, 4, 3, 3), jnp.float32),
        "b1": jnp.zeros((hidden,), jnp.float32),
        "w2": gain * jax.random.normal(k2, (3, hidden, 3, 3), jnp.float32),
        "b2": jnp.zeros((3,), jnp.float32),
    }


def _flat_taps(w):
    # torch conv weight (Cout, Cin, ky, kx) -> (Cout, 9*Cin) bf16 MXU operand,
    # column index = (ky*3 + kx)*Cin + cin (matches the in-kernel tap stacking).
    cout, cin = w.shape[0], w.shape[1]
    return jnp.transpose(w, (0, 2, 3, 1)).reshape(cout, 9 * cin).astype(jnp.bfloat16)


def peipnet_inference(params, mask_nchw, real_nchw, *, images_per_step=None):
    """mode == 'inference': returns (maskedImage, outputImage), both NCHW."""
    B, _, H, W = real_nchw.shape
    hw = H * W
    bb = B if images_per_step is None else images_per_step
    assert B % bb == 0
    ns = B // bb
    npix = bb * hw

    # Wrapper-side layout plumbing: fold `bb` images into the lane (N) axis.
    def to_slab(x, c):
        return (x.reshape(ns, bb, c, hw).transpose(0, 2, 1, 3)
                 .reshape(ns, c, npix).astype(jnp.float32))

    mask = to_slab(mask_nchw, 1)
    real = to_slab(real_nchw, 3)

    w1, w2 = _flat_taps(params["w1"]), _flat_taps(params["w2"])
    b1 = params["b1"].reshape(-1, 1).astype(jnp.float32)
    b2 = params["b2"].reshape(-1, 1).astype(jnp.float32)
    ch = b1.shape[0]
    cin1 = w1.shape[1] // 9

    kernel = functools.partial(_peipnet_kernel, H=H, W=W, bb=bb)
    masked, out = pl.pallas_call(
        kernel,
        out_shape=(jax.ShapeDtypeStruct((ns, 3, npix), jnp.float32),
                   jax.ShapeDtypeStruct((ns, 3, npix), jnp.float32)),
        grid=(ns,),
        in_specs=[
            pl.BlockSpec((None, 1, npix), lambda s: (s, 0, 0)),   # mask
            pl.BlockSpec((None, 3, npix), lambda s: (s, 0, 0)),   # real image
            pl.BlockSpec((ch, 9 * cin1), lambda s: (0, 0)),       # conv1 weights
            pl.BlockSpec((ch, 1), lambda s: (0, 0)),              # conv1 bias
            pl.BlockSpec((3, 9 * ch), lambda s: (0, 0)),          # conv2 weights
            pl.BlockSpec((3, 1), lambda s: (0, 0)),               # conv2 bias
        ],
        out_specs=(pl.BlockSpec((None, 3, npix), lambda s: (s, 0, 0)),
                   pl.BlockSpec((None, 3, npix), lambda s: (s, 0, 0))),
        compiler_params=pltpu.CompilerParams(
            dimension_semantics=("parallel",)),
    )(mask, real, w1, b1, w2, b2)

    def from_slab(y):
        return (y.reshape(ns, 3, bb, hw).transpose(0, 2, 1, 3)
                 .reshape(B, 3, H, W))

    return from_slab(masked), from_slab(out)


# ----------------------------- pure-JAX reference ----------------------------

def _reference(params, mask_nchw, real_nchw):
    """f32 reference for the same stand-in generator (used for a self-check)."""
    mask = mask_nchw.astype(jnp.float32)
    real = real_nchw.astype(jnp.float32)
    masked = real * (1.0 - mask)
    dn = ("NCHW", "OIHW", "NCHW")
    x = jnp.concatenate([masked, mask], axis=1)
    h = jax.lax.conv_general_dilated(x, params["w1"], (1, 1), "SAME",
                                     dimension_numbers=dn)
    h = h + params["b1"].reshape(1, -1, 1, 1)
    mu = jnp.mean(h, axis=(2, 3), keepdims=True)
    var = jnp.mean((h - mu) ** 2, axis=(2, 3), keepdims=True)
    h = jnp.maximum((h - mu) * jax.lax.rsqrt(var + 1e-5), 0.0)
    gen = jax.lax.conv_general_dilated(h, params["w2"], (1, 1), "SAME",
                                       dimension_numbers=dn)
    gen = gen + params["b2"].reshape(1, -1, 1, 1)
    return masked, masked + jnp.tanh(gen) * mask


# ----------------------------- main -------------------------------------------

if __name__ == "__main__":
    key = jax.random.PRNGKey(0)
    kp, km, kr = jax.random.split(key, 3)

    B, H, W = 2, 16, 16
    params = init_params(kp, hidden=32)

    # binary hole mask [B,1,H,W] and real image [B,3,H,W] (NCHW, like PyTorch)
    mask = (jax.random.uniform(km, (B, 1, H, W)) > 0.5).astype(jnp.float32)
    real = jax.random.normal(kr, (B, 3, H, W), jnp.float32)

    fwd = jax.jit(peipnet_inference)
    masked_image, output_image = fwd(params, mask, real)
    jax.block_until_ready((masked_image, output_image))

    assert masked_image.shape == (B, 3, H, W)
    assert output_image.shape == (B, 3, H, W)

    # numerical self-check vs the pure-JAX f32 reference (kernel matmuls: bf16)
    ref_masked, ref_out = _reference(params, mask, real)
    err_m = float(jnp.max(jnp.abs(masked_image - ref_masked)))
    err_o = float(jnp.max(jnp.abs(output_image - ref_out)))
    assert err_m < 1e-5, f"maskedImage mismatch: {err_m}"
    assert err_o < 5e-2, f"outputImage mismatch: {err_o}"
    print("KERNEL_OK")
</pallas_src>

<mosaic_0001>
module attributes {stable_mosaic.version = 11 : i64} {
  func.func @_peipnet_kernel(%arg0: i32, %arg1: memref<1x1x512xf32, #tpu.memory_space<vmem>>, %arg2: memref<1x3x512xf32, #tpu.memory_space<vmem>>, %arg3: memref<32x36xbf16, #tpu.memory_space<vmem>>, %arg4: memref<32x1xf32, #tpu.memory_space<vmem>>, %arg5: memref<3x288xbf16, #tpu.memory_space<vmem>>, %arg6: memref<3x1xf32, #tpu.memory_space<vmem>>, %arg7: memref<1x3x512xf32, #tpu.memory_space<vmem>>, %arg8: memref<1x3x512xf32, #tpu.memory_space<vmem>>) attributes {dimension_semantics = [#tpu.dimension_semantics<parallel>], iteration_bounds = array<i64: 1>, scalar_prefetch = 0 : i64, scratch_operands = 0 : i64, tpu.core_type = #tpu.core_type<tc>, window_params = [{transform_indices = @transform_0, window_bounds = array<i64: 1, 1, 512>}, {transform_indices = @transform_1, window_bounds = array<i64: 1, 3, 512>}, {pipeline_mode = #tpu.pipeline_mode<synchronous>, transform_indices = @transform_2, window_bounds = array<i64: 32, 36>}, {pipeline_mode = #tpu.pipeline_mode<synchronous>, transform_indices = @transform_3, window_bounds = array<i64: 32, 1>}, {pipeline_mode = #tpu.pipeline_mode<synchronous>, transform_indices = @transform_4, window_bounds = array<i64: 3, 288>}, {pipeline_mode = #tpu.pipeline_mode<synchronous>, transform_indices = @transform_5, window_bounds = array<i64: 3, 1>}, {transform_indices = @transform_6, window_bounds = array<i64: 1, 3, 512>}, {transform_indices = @transform_7, window_bounds = array<i64: 1, 3, 512>}]} {
    %c0 = arith.constant 0 : index
    %c0_0 = arith.constant 0 : index
    %c0_1 = arith.constant 0 : index
    %0 = vector.load %arg1[%c0, %c0_0, %c0_1] : memref<1x1x512xf32, #tpu.memory_space<vmem>>, vector<1x1x512xf32>
    %1 = vector.shape_cast %0 : vector<1x1x512xf32> to vector<1x512xf32>
    %c0_2 = arith.constant 0 : index
    %c0_3 = arith.constant 0 : index
    %c0_4 = arith.constant 0 : index
    %2 = vector.load %arg2[%c0_2, %c0_3, %c0_4] : memref<1x3x512xf32, #tpu.memory_space<vmem>>, vector<1x3x512xf32>
    %3 = vector.shape_cast %2 : vector<1x3x512xf32> to vector<3x512xf32>
    %cst = arith.constant 1.000000e+00 : f32
    %4 = vector.broadcast %cst : f32 to vector<1x512xf32>
    %5 = arith.subf %4, %1 : vector<1x512xf32>
    %6 = vector.broadcast %5 : vector<1x512xf32> to vector<3x512xf32>
    %7 = arith.mulf %3, %6 : vector<3x512xf32>
    %c0_5 = arith.constant 0 : index
    %c0_6 = arith.constant 0 : index
    %c0_7 = arith.constant 0 : index
    %8 = vector.load %arg7[%c0_5, %c0_6, %c0_7] : memref<1x3x512xf32, #tpu.memory_space<vmem>>, vector<1x3x512xf32>
    %9 = vector.shape_cast %8 : vector<1x3x512xf32> to vector<3x512xf32>
    %10 = vector.shape_cast %7 : vector<3x512xf32> to vector<1x3x512xf32>
    tpu.vector_store %arg7[%c0_5, %c0_6, %c0_7], %10 {strides = array<i32>} : memref<1x3x512xf32, #tpu.memory_space<vmem>>, vector<1x3x512xf32>,
    %11 = tpu.iota {dimensions = array<i32: 1>} : vector<1x512xi32>
    %c15_i32 = arith.constant 15 : i32
    %12 = vector.broadcast %c15_i32 : i32 to vector<1x512xi32>
    %13 = arith.andi %11, %12 : vector<1x512xi32>
    %c4_i32 = arith.constant 4 : i32
    %14 = vector.broadcast %c4_i32 : i32 to vector<1x512xi32>
    %15 = arith.shrsi %11, %14 : vector<1x512xi32>
    %c15_i32_8 = arith.constant 15 : i32
    %16 = vector.broadcast %c15_i32_8 : i32 to vector<1x512xi32>
    %17 = arith.andi %15, %16 : vector<1x512xi32>
    %c1_i32 = arith.constant 1 : i32
    %18 = vector.broadcast %c1_i32 : i32 to vector<1x512xi32>
    %19 = arith.cmpi sge, %13, %18 : vector<1x512xi32>
    %c14_i32 = arith.constant 14 : i32
    %20 = vector.broadcast %c14_i32 : i32 to vector<1x512xi32>
    %21 = arith.cmpi sle, %13, %20 : vector<1x512xi32>
    %c1_i32_9 = arith.constant 1 : i32
    %22 = vector.broadcast %c1_i32_9 : i32 to vector<1x512xi32>
    %23 = arith.cmpi sge, %17, %22 : vector<1x512xi32>
    %c14_i32_10 = arith.constant 14 : i32
    %24 = vector.broadcast %c14_i32_10 : i32 to vector<1x512xi32>
    %25 = arith.cmpi sle, %17, %24 : vector<1x512xi32>
    %26 = arith.andi %23, %19 : vector<1x512xi1>
    %27 = arith.andi %23, %21 : vector<1x512xi1>
    %28 = arith.andi %25, %19 : vector<1x512xi1>
    %29 = arith.andi %25, %21 : vector<1x512xi1>
    %30 = tpu.concatenate %7, %1 in 0 : vector<3x512xf32>, vector<1x512xf32> -> vector<4x512xf32>
    %c17_i32 = arith.constant 17 : i32
    %31 = tpu.dynamic_rotate %30 by %c17_i32 dim 1 : vector<4x512xf32>, i32 -> vector<4x512xf32>
    %cst_11 = arith.constant 0.000000e+00 : f32
    %32 = vector.shape_cast %26 : vector<1x512xi1> to vector<1x512xi1>
    %33 = vector.broadcast %32 : vector<1x512xi1> to vector<4x512xi1>
    %34 = vector.broadcast %cst_11 : f32 to vector<4x512xf32>
    %35 = arith.select %33, %31, %34 : vector<4x512xi1>, vector<4x512xf32>
    %c16_i32 = arith.constant 16 : i32
    %36 = tpu.dynamic_rotate %30 by %c16_i32 dim 1 : vector<4x512xf32>, i32 -> vector<4x512xf32>
    %cst_12 = arith.constant 0.000000e+00 : f32
    %37 = vector.shape_cast %23 : vector<1x512xi1> to vector<1x512xi1>
    %38 = vector.broadcast %37 : vector<1x512xi1> to vector<4x512xi1>
    %39 = vector.broadcast %cst_12 : f32 to vector<4x512xf32>
    %40 = arith.select %38, %36, %39 : vector<4x512xi1>, vector<4x512xf32>
    %c15_i32_13 = arith.constant 15 : i32
    %41 = tpu.dynamic_rotate %30 by %c15_i32_13 dim 1 : vector<4x512xf32>, i32 -> vector<4x512xf32>
    %cst_14 = arith.constant 0.000000e+00 : f32
    %42 = vector.shape_cast %27 : vector<1x512xi1> to vector<1x512xi1>
    %43 = vector.broadcast %42 : vector<1x512xi1> to vector<4x512xi1>
    %44 = vector.broadcast %cst_14 : f32 to vector<4x512xf32>
    %45 = arith.select %43, %41, %44 : vector<4x512xi1>, vector<4x512xf32>
    %c1_i32_15 = arith.constant 1 : i32
    %46 = tpu.dynamic_rotate %30 by %c1_i32_15 dim 1 : vector<4x512xf32>, i32 -> vector<4x512xf32>
    %cst_16 = arith.constant 0.000000e+00 : f32
    %47 = vector.shape_cast %19 : vector<1x512xi1> to vector<1x512xi1>
    %48 = vector.broadcast %47 : vector<1x512xi1> to vector<4x512xi1>
    %49 = vector.broadcast %cst_16 : f32 to vector<4x512xf32>
    %50 = arith.select %48, %46, %49 : vector<4x512xi1>, vector<4x512xf32>
    %c511_i32 = arith.constant 511 : i32
    %51 = tpu.dynamic_rotate %30 by %c511_i32 dim 1 : vector<4x512xf32>, i32 -> vector<4x512xf32>
    %cst_17 = arith.constant 0.000000e+00 : f32
    %52 = vector.shape_cast %21 : vector<1x512xi1> to vector<1x512xi1>
    %53 = vector.broadcast %52 : vector<1x512xi1> to vector<4x512xi1>
    %54 = vector.broadcast %cst_17 : f32 to vector<4x512xf32>
    %55 = arith.select %53, %51, %54 : vector<4x512xi1>, vector<4x512xf32>
    %c497_i32 = arith.constant 497 : i32
    %56 = tpu.dynamic_rotate %30 by %c497_i32 dim 1 : vector<4x512xf32>, i32 -> vector<4x512xf32>
    %cst_18 = arith.constant 0.000000e+00 : f32
    %57 = vector.shape_cast %28 : vector<1x512xi1> to vector<1x512xi1>
    %58 = vector.broadcast %57 : vector<1x512xi1> to vector<4x512xi1>
    %59 = vector.broadcast %cst_18 : f32 to vector<4x512xf32>
    %60 = arith.select %58, %56, %59 : vector<4x512xi1>, vector<4x512xf32>
    %c496_i32 = arith.constant 496 : i32
    %61 = tpu.dynamic_rotate %30 by %c496_i32 dim 1 : vector<4x512xf32>, i32 -> vector<4x512xf32>
    %cst_19 = arith.constant 0.000000e+00 : f32
    %62 = vector.shape_cast %25 : vector<1x512xi1> to vector<1x512xi1>
    %63 = vector.broadcast %62 : vector<1x512xi1> to vector<4x512xi1>
    %64 = vector.broadcast %cst_19 : f32 to vector<4x512xf32>
    %65 = arith.select %63, %61, %64 : vector<4x512xi1>, vector<4x512xf32>
    %c495_i32 = arith.constant 495 : i32
    %66 = tpu.dynamic_rotate %30 by %c495_i32 dim 1 : vector<4x512xf32>, i32 -> vector<4x512xf32>
    %cst_20 = arith.constant 0.000000e+00 : f32
    %67 = vector.shape_cast %29 : vector<1x512xi1> to vector<1x512xi1>
    %68 = vector.broadcast %67 : vector<1x512xi1> to vector<4x512xi1>
    %69 = vector.broadcast %cst_20 : f32 to vector<4x512xf32>
    %70 = arith.select %68, %66, %69 : vector<4x512xi1>, vector<4x512xf32>
    %71 = tpu.concatenate %35, %40, %45, %50, %30, %55, %60, %65, %70 in 0 : vector<4x512xf32>, vector<4x512xf32>, vector<4x512xf32>, vector<4x512xf32>, vector<4x512xf32>, vector<4x512xf32>, vector<4x512xf32>, vector<4x512xf32>, vector<4x512xf32> -> vector<36x512xf32>
    %72 = arith.truncf %71 : vector<36x512xf32> to vector<36x512xbf16>
    %c0_21 = arith.constant 0 : index
    %c0_22 = arith.constant 0 : index
    %73 = vector.load %arg3[%c0_21, %c0_22] : memref<32x36xbf16, #tpu.memory_space<vmem>>, vector<32x36xbf16>
    %cst_23 = arith.constant dense<0.000000e+00> : vector<32x512xf32>
    %74 = tpu.matmul %73, %72, %cst_23 {dimension_numbers = #tpu.dot_dimension_numbers<[1], [0], [0], [1], [0, 0, 1, 1], [], []>} : vector<32x36xbf16>, vector<36x512xbf16>, vector<32x512xf32> -> vector<32x512xf32>
    %c0_24 = arith.constant 0 : index
    %c0_25 = arith.constant 0 : index
    %75 = vector.load %arg4[%c0_24, %c0_25] : memref<32x1xf32, #tpu.memory_space<vmem>>, vector<32x1xf32>
    %76 = vector.broadcast %75 : vector<32x1xf32> to vector<32x512xf32>
    %77 = arith.addf %74, %76 : vector<32x512xf32>
    %78 = vector.extract_strided_slice %77 {offsets = [0, 0], sizes = [32, 256], strides = [1, 1]} : vector<32x512xf32> to vector<32x256xf32>
    %cst_26 = arith.constant dense<0.000000e+00> : vector<32xf32>
    %79 = vector.multi_reduction <add>, %78, %cst_26 [1] : vector<32x256xf32> to vector<32xf32>
    %80 = vector.shape_cast %79 : vector<32xf32> to vector<32x1xf32>
    %81 = arith.mulf %78, %78 : vector<32x256xf32>
    %cst_27 = arith.constant dense<0.000000e+00> : vector<32xf32>
    %82 = vector.multi_reduction <add>, %81, %cst_27 [1] : vector<32x256xf32> to vector<32xf32>
    %83 = vector.shape_cast %82 : vector<32xf32> to vector<32x1xf32>
    %cst_28 = arith.constant 3.906250e-03 : f32
    %84 = vector.broadcast %cst_28 : f32 to vector<32x1xf32>
    %85 = arith.mulf %80, %84 : vector<32x1xf32>
    %cst_29 = arith.constant 3.906250e-03 : f32
    %86 = vector.broadcast %cst_29 : f32 to vector<32x1xf32>
    %87 = arith.mulf %83, %86 : vector<32x1xf32>
    %88 = arith.mulf %85, %85 : vector<32x1xf32>
    %89 = arith.subf %87, %88 : vector<32x1xf32>
    %90 = vector.broadcast %85 : vector<32x1xf32> to vector<32x256xf32>
    %91 = arith.subf %78, %90 : vector<32x256xf32>
    %cst_30 = arith.constant 9.99999974E-6 : f32
    %92 = vector.broadcast %cst_30 : f32 to vector<32x1xf32>
    %93 = arith.addf %89, %92 : vector<32x1xf32>
    %94 = math.rsqrt %93 : vector<32x1xf32>
    %95 = vector.broadcast %94 : vector<32x1xf32> to vector<32x256xf32>
    %96 = arith.mulf %91, %95 : vector<32x256xf32>
    %cst_31 = arith.constant 0.000000e+00 : f32
    %97 = vector.broadcast %cst_31 : f32 to vector<32x256xf32>
    %98 = arith.maximumf %96, %97 : vector<32x256xf32>
    %99 = vector.extract_strided_slice %77 {offsets = [0, 256], sizes = [32, 256], strides = [1, 1]} : vector<32x512xf32> to vector<32x256xf32>
    %cst_32 = arith.constant dense<0.000000e+00> : vector<32xf32>
    %100 = vector.multi_reduction <add>, %99, %cst_32 [1] : vector<32x256xf32> to vector<32xf32>
    %101 = vector.shape_cast %100 : vector<32xf32> to vector<32x1xf32>
    %102 = arith.mulf %99, %99 : vector<32x256xf32>
    %cst_33 = arith.constant dense<0.000000e+00> : vector<32xf32>
    %103 = vector.multi_reduction <add>, %102, %cst_33 [1] : vector<32x256xf32> to vector<32xf32>
    %104 = vector.shape_cast %103 : vector<32xf32> to vector<32x1xf32>
    %cst_34 = arith.constant 3.906250e-03 : f32
    %105 = vector.broadcast %cst_34 : f32 to vector<32x1xf32>
    %106 = arith.mulf %101, %105 : vector<32x1xf32>
    %cst_35 = arith.constant 3.906250e-03 : f32
    %107 = vector.broadcast %cst_35 : f32 to vector<32x1xf32>
    %108 = arith.mulf %104, %107 : vector<32x1xf32>
    %109 = arith.mulf %106, %106 : vector<32x1xf32>
    %110 = arith.subf %108, %109 : vector<32x1xf32>
    %111 = vector.broadcast %106 : vector<32x1xf32> to vector<32x256xf32>
    %112 = arith.subf %99, %111 : vector<32x256xf32>
    %cst_36 = arith.constant 9.99999974E-6 : f32
    %113 = vector.broadcast %cst_36 : f32 to vector<32x1xf32>
    %114 = arith.addf %110, %113 : vector<32x1xf32>
    %115 = math.rsqrt %114 : vector<32x1xf32>
    %116 = vector.broadcast %115 : vector<32x1xf32> to vector<32x256xf32>
    %117 = arith.mulf %112, %116 : vector<32x256xf32>
    %cst_37 = arith.constant 0.000000e+00 : f32
    %118 = vector.broadcast %cst_37 : f32 to vector<32x256xf32>
    %119 = arith.maximumf %117, %118 : vector<32x256xf32>
    %120 = tpu.concatenate %98, %119 in 1 : vector<32x256xf32>, vector<32x256xf32> -> vector<32x512xf32>
    %c17_i32_38 = arith.constant 17 : i32
    %121 = tpu.dynamic_rotate %120 by %c17_i32_38 dim 1 : vector<32x512xf32>, i32 -> vector<32x512xf32>
    %cst_39 = arith.constant 0.000000e+00 : f32
    %122 = vector.shape_cast %26 : vector<1x512xi1> to vector<1x512xi1>
    %123 = vector.broadcast %122 : vector<1x512xi1> to vector<32x512xi1>
    %124 = vector.broadcast %cst_39 : f32 to vector<32x512xf32>
    %125 = arith.select %123, %121, %124 : vector<32x512xi1>, vector<32x512xf32>
    %c16_i32_40 = arith.constant 16 : i32
    %126 = tpu.dynamic_rotate %120 by %c16_i32_40 dim 1 : vector<32x512xf32>, i32 -> vector<32x512xf32>
    %cst_41 = arith.constant 0.000000e+00 : f32
    %127 = vector.shape_cast %23 : vector<1x512xi1> to vector<1x512xi1>
    %128 = vector.broadcast %127 : vector<1x512xi1> to vector<32x512xi1>
    %129 = vector.broadcast %cst_41 : f32 to vector<32x512xf32>
    %130 = arith.select %128, %126, %129 : vector<32x512xi1>, vector<32x512xf32>
    %c15_i32_42 = arith.constant 15 : i32
    %131 = tpu.dynamic_rotate %120 by %c15_i32_42 dim 1 : vector<32x512xf32>, i32 -> vector<32x512xf32>
    %cst_43 = arith.constant 0.000000e+00 : f32
    %132 = vector.shape_cast %27 : vector<1x512xi1> to vector<1x512xi1>
    %133 = vector.broadcast %132 : vector<1x512xi1> to vector<32x512xi1>
    %134 = vector.broadcast %cst_43 : f32 to vector<32x512xf32>
    %135 = arith.select %133, %131, %134 : vector<32x512xi1>, vector<32x512xf32>
    %c1_i32_44 = arith.constant 1 : i32
    %136 = tpu.dynamic_rotate %120 by %c1_i32_44 dim 1 : vector<32x512xf32>, i32 -> vector<32x512xf32>
    %cst_45 = arith.constant 0.000000e+00 : f32
    %137 = vector.shape_cast %19 : vector<1x512xi1> to vector<1x512xi1>
    %138 = vector.broadcast %137 : vector<1x512xi1> to vector<32x512xi1>
    %139 = vector.broadcast %cst_45 : f32 to vector<32x512xf32>
    %140 = arith.select %138, %136, %139 : vector<32x512xi1>, vector<32x512xf32>
    %c511_i32_46 = arith.constant 511 : i32
    %141 = tpu.dynamic_rotate %120 by %c511_i32_46 dim 1 : vector<32x512xf32>, i32 -> vector<32x512xf32>
    %cst_47 = arith.constant 0.000000e+00 : f32
    %142 = vector.shape_cast %21 : vector<1x512xi1> to vector<1x512xi1>
    %143 = vector.broadcast %142 : vector<1x512xi1> to vector<32x512xi1>
    %144 = vector.broadcast %cst_47 : f32 to vector<32x512xf32>
    %145 = arith.select %143, %141, %144 : vector<32x512xi1>, vector<32x512xf32>
    %c497_i32_48 = arith.constant 497 : i32
    %146 = tpu.dynamic_rotate %120 by %c497_i32_48 dim 1 : vector<32x512xf32>, i32 -> vector<32x512xf32>
    %cst_49 = arith.constant 0.000000e+00 : f32
    %147 = vector.shape_cast %28 : vector<1x512xi1> to vector<1x512xi1>
    %148 = vector.broadcast %147 : vector<1x512xi1> to vector<32x512xi1>
    %149 = vector.broadcast %cst_49 : f32 to vector<32x512xf32>
    %150 = arith.select %148, %146, %149 : vector<32x512xi1>, vector<32x512xf32>
    %c496_i32_50 = arith.constant 496 : i32
    %151 = tpu.dynamic_rotate %120 by %c496_i32_50 dim 1 : vector<32x512xf32>, i32 -> vector<32x512xf32>
    %cst_51 = arith.constant 0.000000e+00 : f32
    %152 = vector.shape_cast %25 : vector<1x512xi1> to vector<1x512xi1>
    %153 = vector.broadcast %152 : vector<1x512xi1> to vector<32x512xi1>
    %154 = vector.broadcast %cst_51 : f32 to vector<32x512xf32>
    %155 = arith.select %153, %151, %154 : vector<32x512xi1>, vector<32x512xf32>
    %c495_i32_52 = arith.constant 495 : i32
    %156 = tpu.dynamic_rotate %120 by %c495_i32_52 dim 1 : vector<32x512xf32>, i32 -> vector<32x512xf32>
    %cst_53 = arith.constant 0.000000e+00 : f32
    %157 = vector.shape_cast %29 : vector<1x512xi1> to vector<1x512xi1>
    %158 = vector.broadcast %157 : vector<1x512xi1> to vector<32x512xi1>
    %159 = vector.broadcast %cst_53 : f32 to vector<32x512xf32>
    %160 = arith.select %158, %156, %159 : vector<32x512xi1>, vector<32x512xf32>
    %161 = tpu.concatenate %125, %130, %135, %140, %120, %145, %150, %155, %160 in 0 : vector<32x512xf32>, vector<32x512xf32>, vector<32x512xf32>, vector<32x512xf32>, vector<32x512xf32>, vector<32x512xf32>, vector<32x512xf32>, vector<32x512xf32>, vector<32x512xf32> -> vector<288x512xf32>
    %162 = arith.truncf %161 : vector<288x512xf32> to vector<288x512xbf16>
    %c0_54 = arith.constant 0 : index
    %c0_55 = arith.constant 0 : index
    %163 = vector.load %arg5[%c0_54, %c0_55] : memref<3x288xbf16, #tpu.memory_space<vmem>>, vector<3x288xbf16>
    %cst_56 = arith.constant dense<0.000000e+00> : vector<3x512xf32>
    %164 = tpu.matmul %163, %162, %cst_56 {dimension_numbers = #tpu.dot_dimension_numbers<[1], [0], [0], [1], [0, 0, 1, 1], [], []>} : vector<3x288xbf16>, vector<288x512xbf16>, vector<3x512xf32> -> vector<3x512xf32>
    %c0_57 = arith.constant 0 : index
    %c0_58 = arith.constant 0 : index
    %165 = vector.load %arg6[%c0_57, %c0_58] : memref<3x1xf32, #tpu.memory_space<vmem>>, vector<3x1xf32>
    %166 = vector.broadcast %165 : vector<3x1xf32> to vector<3x512xf32>
    %167 = arith.addf %164, %166 : vector<3x512xf32>
    %168 = math.tanh %167 : vector<3x512xf32>
    %169 = vector.broadcast %1 : vector<1x512xf32> to vector<3x512xf32>
    %170 = arith.mulf %168, %169 : vector<3x512xf32>
    %171 = arith.addf %7, %170 : vector<3x512xf32>
    %c0_59 = arith.constant 0 : index
    %c0_60 = arith.constant 0 : index
    %c0_61 = arith.constant 0 : index
    %172 = vector.load %arg8[%c0_59, %c0_60, %c0_61] : memref<1x3x512xf32, #tpu.memory_space<vmem>>, vector<1x3x512xf32>
    %173 = vector.shape_cast %172 : vector<1x3x512xf32> to vector<3x512xf32>
    %174 = vector.shape_cast %171 : vector<3x512xf32> to vector<1x3x512xf32>
    tpu.vector_store %arg8[%c0_59, %c0_60, %c0_61], %174 {strides = array<i32>} : memref<1x3x512xf32, #tpu.memory_space<vmem>>, vector<1x3x512xf32>,
    return
  }
  func.func @transform_0(%arg0: i32) -> (i32, i32, i32) {
    %c0_i32 = arith.constant 0 : i32
    %c0_i32_0 = arith.constant 0 : i32
    %c0_i32_1 = arith.constant 0 : i32
    return %arg0, %c0_i32, %c0_i32_0 : i32, i32, i32
  }
  func.func @transform_1(%arg0: i32) -> (i32, i32, i32) {
    %c0_i32 = arith.constant 0 : i32
    %c0_i32_0 = arith.constant 0 : i32
    %c0_i32_1 = arith.constant 0 : i32
    return %arg0, %c0_i32, %c0_i32_0 : i32, i32, i32
  }
  func.func @transform_2(%arg0: i32) -> (i32, i32) {
    %c0_i32 = arith.constant 0 : i32
    %c0_i32_0 = arith.constant 0 : i32
    %c0_i32_1 = arith.constant 0 : i32
    return %c0_i32, %c0_i32_0 : i32, i32
  }
  func.func @transform_3(%arg0: i32) -> (i32, i32) {
    %c0_i32 = arith.constant 0 : i32
    %c0_i32_0 = arith.constant 0 : i32
    %c0_i32_1 = arith.constant 0 : i32
    return %c0_i32, %c0_i32_0 : i32, i32
  }
  func.func @transform_4(%arg0: i32) -> (i32, i32) {
    %c0_i32 = arith.constant 0 : i32
    %c0_i32_0 = arith.constant 0 : i32
    %c0_i32_1 = arith.constant 0 : i32
    return %c0_i32, %c0_i32_0 : i32, i32
  }
  func.func @transform_5(%arg0: i32) -> (i32, i32) {
    %c0_i32 = arith.constant 0 : i32
    %c0_i32_0 = arith.constant 0 : i32
    %c0_i32_1 = arith.constant 0 : i32
    return %c0_i32, %c0_i32_0 : i32, i32
  }
  func.func @transform_6(%arg0: i32) -> (i32, i32, i32) {
    %c0_i32 = arith.constant 0 : i32
    %c0_i32_0 = arith.constant 0 : i32
    %c0_i32_1 = arith.constant 0 : i32
    return %arg0, %c0_i32, %c0_i32_0 : i32, i32, i32
  }
  func.func @transform_7(%arg0: i32) -> (i32, i32, i32) {
    %c0_i32 = arith.constant 0 : i32
    %c0_i32_0 = arith.constant 0 : i32
    %c0_i32_1 = arith.constant 0 : i32
    return %arg0, %c0_i32, %c0_i32_0 : i32, i32, i32
  }
}

</mosaic_0001>

<llo_original>
// kernel: peipnet_inference.1
$region0: #{peipnet_inference.1}
  #allocation0 [shape = 'u32[]', space=smem, size = 0x4, offset = 0x4, fixed_abs, tag = 'smem constant byte address 0x4 - core index']
  #allocation1 [shape = 'u32[144,128]{1,0:T(1,128)}', space=vmem, size = 0x12000, scoped, tag = 'internal scratch']
  %s0 = inlined_call_operand.vmem [shape: f32[1,1,512], index: 0, kind: input, shape index: {}]
  %s1 = inlined_call_operand.vmem [shape: f32[1,3,512], index: 1, kind: input, shape index: {}]
  %s2 = inlined_call_operand.vmem [shape: bf16[32,36], index: 2, kind: input, shape index: {}]
  %s3 = inlined_call_operand.vmem [shape: f32[32,1], index: 3, kind: input, shape index: {}]
  %s4 = inlined_call_operand.vmem [shape: bf16[3,288], index: 4, kind: input, shape index: {}]
  %s5 = inlined_call_operand.vmem [shape: f32[3,1], index: 5, kind: input, shape index: {}]
  %s6 = inlined_call_operand.vmem [shape: f32[1,3,512], index: 6, kind: output, shape index: {0}]
  %s7 = inlined_call_operand.vmem [shape: f32[1,3,512], index: 7, kind: output, shape index: {1}]
  %8 = xla_tuple %s6, %s7
  %s9 = sld [smem:[#allocation0]]
  $region42: #{peipnet_inference.1} parent=0
    _
  %s11 = ssub.s32 1, %s9
  %s12 = scalar_select 0, %s11, %s9
  // Predicated region
  $region2: #{peipnet_inference.1} parent=0 // pred_check
    _
  $region3: #{peipnet_inference.1} parent=0 // pred_check_branch
    %14 = sbr.rel (0) target = $region5
  $region4: #{peipnet_inference.1} parent=0 // pred_region
    _
  $region5: #{peipnet_inference.1} parent=0 // pred_fallthru
    _
  // Predicated region
  $region6: #{peipnet_inference.1} parent=0 // pred_check
    _
  $region7: #{peipnet_inference.1} parent=0 // pred_check_branch
    %16 = sbr.rel (0) target = $region9
  $region8: #{peipnet_inference.1} parent=0 // pred_region
    _
  $region9: #{peipnet_inference.1} parent=0 // pred_fallthru
    _
  // Predicated region
  $region10: #{peipnet_inference.1} parent=0 // pred_check
    _
  $region11: #{peipnet_inference.1} parent=0 // pred_check_branch
    %18 = sbr.rel (0) target = $region13
  $region12: #{peipnet_inference.1} parent=0 // pred_region
    _
  $region13: #{peipnet_inference.1} parent=0 // pred_fallthru
    _
  // Predicated region
  $region14: #{peipnet_inference.1} parent=0 // pred_check
    _
  $region15: #{peipnet_inference.1} parent=0 // pred_check_branch
    %20 = sbr.rel (0) target = $region17
  $region16: #{peipnet_inference.1} parent=0 // pred_region
    _
  $region17: #{peipnet_inference.1} parent=0 // pred_fallthru
    _
  // Predicated region
  $region18: #{peipnet_inference.1} parent=0 // pred_check
    _
  $region19: #{peipnet_inference.1} parent=0 // pred_check_branch
    %22 = sbr.rel (0) target = $region21
  $region20: #{peipnet_inference.1} parent=0 // pred_region
    _
  $region21: #{peipnet_inference.1} parent=0 // pred_fallthru
    _
  // Predicated region
  $region22: #{peipnet_inference.1} parent=0 // pred_check
    _
  $region23: #{peipnet_inference.1} parent=0 // pred_check_branch
    %24 = sbr.rel (0) target = $region25
  $region24: #{peipnet_inference.1} parent=0 // pred_region
    _
  $region25: #{peipnet_inference.1} parent=0 // pred_fallthru
    _
  %v26 = vld [vmem:[%s0] sm:$0xf]
  %v27 = vld [vmem:[%s1] sm:$0x77]
  %v28 = vld [vmem:[%s1 + $0x8] sm:$0x77]
  %v29 = vsub.f32 1.0, %v26
  %v31 = vlaneseq
  %v32 = vshrl.u32 %v31, 7
  %v33 = vsub.s32 0, %v32
  %v34 = vrot.slane %v29, %v33
  %v35 = vlaneseq
  %v36 = vshrl.u32 %v35, 7
  %v37 = vsub.s32 1, %v36
  %v38 = vrot.slane %v29, %v37
  %v39 = vlaneseq
  %v40 = vshrl.u32 %v39, 7
  %v41 = vsub.s32 2, %v40
  %v42 = vrot.slane %v29, %v41
  %v43 = vlaneseq
  %v44 = vshrl.u32 %v43, 7
  %v45 = vsub.s32 3, %v44
  %v46 = vrot.slane %v29, %v45
  %v47 = vcombine.low %v34, %v38
  %v48 = vcombine.low %v42, %v46
  %v51 = vmul.f32 %v27, %v47
  %v52 = vmul.f32 %v28, %v48
  %53 = vst [vmem:[%s6] sm:$0x77] %v51
  %54 = vst [vmem:[%s6 + $0x8] sm:$0x77] %v52
  %v55 = vlaneseq
  %v56 = vand.u32 %v55, 127
  %v57 = vadd.s32 %v56, 128
  %v58 = vadd.s32 %v56, 256
  %v59 = vadd.s32 %v56, 384
  %v60 = vand.u32 %v56, 15
  %v61 = vand.u32 %v57, 15
  %v62 = vand.u32 %v58, 15
  %v63 = vand.u32 %v59, 15
  %v64 = vshra.s32 %v56, 4
  %v65 = vshra.s32 %v57, 4
  %v66 = vshra.s32 %v58, 4
  %v67 = vshra.s32 %v59, 4
  %v68 = vand.u32 %v64, 15
  %v69 = vand.u32 %v65, 15
  %v70 = vand.u32 %v66, 15
  %v71 = vand.u32 %v67, 15
  %vm72 = vcmp.ge.s32.totalorder %v60, 1
  %vm73 = vcmp.ge.s32.totalorder %v61, 1
  %vm74 = vcmp.ge.s32.totalorder %v62, 1
  %vm75 = vcmp.ge.s32.totalorder %v63, 1
  %vm76 = vcmp.le.s32.totalorder %v60, 14
  %vm77 = vcmp.le.s32.totalorder %v61, 14
  %vm78 = vcmp.le.s32.totalorder %v62, 14
  %vm79 = vcmp.le.s32.totalorder %v63, 14
  %vm80 = vcmp.ge.s32.totalorder %v68, 1
  %vm81 = vcmp.ge.s32.totalorder %v69, 1
  %vm82 = vcmp.ge.s32.totalorder %v70, 1
  %vm83 = vcmp.ge.s32.totalorder %v71, 1
  %vm84 = vcmp.le.s32.totalorder %v68, 14
  %vm85 = vcmp.le.s32.totalorder %v69, 14
  %vm86 = vcmp.le.s32.totalorder %v70, 14
  %vm87 = vcmp.le.s32.totalorder %v71, 14
  %vm88 = vmand %vm80, %vm72
  %vm89 = vmand %vm81, %vm73
  %vm90 = vmand %vm82, %vm74
  %vm91 = vmand %vm83, %vm75
  %vm92 = vmand %vm80, %vm76
  %vm93 = vmand %vm81, %vm77
  %vm94 = vmand %vm82, %vm78
  %vm95 = vmand %vm83, %vm79
  %vm96 = vmand %vm84, %vm72
  %vm97 = vmand %vm85, %vm73
  %vm98 = vmand %vm86, %vm74
  %vm99 = vmand %vm87, %vm75
  %vm100 = vmand %vm84, %vm76
  %vm101 = vmand %vm85, %vm77
  %vm102 = vmand %vm86, %vm78
  %vm103 = vmand %vm87, %vm79
  %v106 = vcombine.high %v51, %v51
  %v107 = vcombine.high %v52, %v52
  %v111 = vlaneseq
  %v112 = vshrl.u32 %v111, 7
  %v113 = vsub.s32 0, %v112
  %v114 = vrot.slane %v26, %v113
  %v115 = vlaneseq
  %v116 = vshrl.u32 %v115, 7
  %v117 = vsub.s32 1, %v116
  %v118 = vrot.slane %v26, %v117
  %v119 = vlaneseq
  %v120 = vshrl.u32 %v119, 7
  %v121 = vsub.s32 2, %v120
  %v122 = vrot.slane %v26, %v121
  %v123 = vlaneseq
  %v124 = vshrl.u32 %v123, 7
  %v125 = vsub.s32 3, %v124
  %v126 = vrot.slane %v26, %v125
  %vm131 = vcmask 1042432
  %v132 = vsel %vm131, %v51, %v114
  %v133 = vsel %vm131, %v106, %v118
  %v134 = vsel %vm131, %v52, %v122
  %v135 = vsel %vm131, %v107, %v126
  %136 = vrot.lane.b32.xlu0 %v132, 17
  %v137 = vpop.permute.xlu0 %136
  %138 = vrot.lane.b32.xlu0 %v133, 17
  %v139 = vpop.permute.xlu0 %138
  %140 = vrot.lane.b32.xlu0 %v134, 17
  %v141 = vpop.permute.xlu0 %140
  %142 = vrot.lane.b32.xlu0 %v135, 17
  %v143 = vpop.permute.xlu0 %142
  %vm144 = vcmp.lt.s32.totalorder %v56, 17
  %v145 = vsel %vm144, %v141, %v143
  %v146 = vsel %vm144, %v139, %v141
  %v147 = vsel %vm144, %v137, %v139
  %v148 = vsel %vm144, %v143, %v137
  %v149 = vsel %vm88, 1, 0
  %v150 = vsel %vm89, 1, 0
  %v151 = vsel %vm90, 1, 0
  %v152 = vsel %vm91, 1, 0
  %vm153 = vcmp.eq.s32.totalorder %v149, 1
  %vm154 = vcmp.eq.s32.totalorder %v150, 1
  %vm155 = vcmp.eq.s32.totalorder %v151, 1
  %vm156 = vcmp.eq.s32.totalorder %v152, 1
  %v157 = vsel %vm153, %v148, 0.0
  %v158 = vsel %vm154, %v147, 0.0
  %v159 = vsel %vm155, %v146, 0.0
  %v160 = vsel %vm156, %v145, 0.0
  %161 = vrot.lane.b32.xlu0 %v132, 16
  %v162 = vpop.permute.xlu0 %161
  %163 = vrot.lane.b32.xlu0 %v133, 16
  %v164 = vpop.permute.xlu0 %163
  %165 = vrot.lane.b32.xlu0 %v134, 16
  %v166 = vpop.permute.xlu0 %165
  %167 = vrot.lane.b32.xlu0 %v135, 16
  %v168 = vpop.permute.xlu0 %167
  %vm169 = vcmp.lt.s32.totalorder %v56, 16
  %v170 = vsel %vm169, %v166, %v168
  %v171 = vsel %vm169, %v164, %v166
  %v172 = vsel %vm169, %v162, %v164
  %v173 = vsel %vm169, %v168, %v162
  %v174 = vsel %vm80, 1, 0
  %v175 = vsel %vm81, 1, 0
  %v176 = vsel %vm82, 1, 0
  %v177 = vsel %vm83, 1, 0
  %vm178 = vcmp.eq.s32.totalorder %v174, 1
  %vm179 = vcmp.eq.s32.totalorder %v175, 1
  %vm180 = vcmp.eq.s32.totalorder %v176, 1
  %vm181 = vcmp.eq.s32.totalorder %v177, 1
  %v182 = vsel %vm178, %v173, 0.0
  %v183 = vsel %vm179, %v172, 0.0
  %v184 = vsel %vm180, %v171, 0.0
  %v185 = vsel %vm181, %v170, 0.0
  %186 = vrot.lane.b32.xlu0 %v132, 15
  %v187 = vpop.permute.xlu0 %186
  %188 = vrot.lane.b32.xlu0 %v133, 15
  %v189 = vpop.permute.xlu0 %188
  %190 = vrot.lane.b32.xlu0 %v134, 15
  %v191 = vpop.permute.xlu0 %190
  %192 = vrot.lane.b32.xlu0 %v135, 15
  %v193 = vpop.permute.xlu0 %192
  %vm194 = vcmp.lt.s32.totalorder %v56, 15
  %v195 = vsel %vm194, %v191, %v193
  %v196 = vsel %vm194, %v189, %v191
  %v197 = vsel %vm194, %v187, %v189
  %v198 = vsel %vm194, %v193, %v187
  %v199 = vsel %vm92, 1, 0
  %v200 = vsel %vm93, 1, 0
  %v201 = vsel %vm94, 1, 0
  %v202 = vsel %vm95, 1, 0
  %vm203 = vcmp.eq.s32.totalorder %v199, 1
  %vm204 = vcmp.eq.s32.totalorder %v200, 1
  %vm205 = vcmp.eq.s32.totalorder %v201, 1
  %vm206 = vcmp.eq.s32.totalorder %v202, 1
  %v207 = vsel %vm203, %v198, 0.0
  %v208 = vsel %vm204, %v197, 0.0
  %v209 = vsel %vm205, %v196, 0.0
  %v210 = vsel %vm206, %v195, 0.0
  %211 = vrot.lane.b32.xlu0 %v132, 1
  %v212 = vpop.permute.xlu0 %211
  %213 = vrot.lane.b32.xlu0 %v133, 1
  %v214 = vpop.permute.xlu0 %213
  %215 = vrot.lane.b32.xlu0 %v134, 1
  %v216 = vpop.permute.xlu0 %215
  %217 = vrot.lane.b32.xlu0 %v135, 1
  %v218 = vpop.permute.xlu0 %217
  %vm219 = vcmp.lt.s32.totalorder %v56, 1
  %v220 = vsel %vm219, %v216, %v218
  %v221 = vsel %vm219, %v214, %v216
  %v222 = vsel %vm219, %v212, %v214
  %v223 = vsel %vm219, %v218, %v212
  %v224 = vsel %vm72, 1, 0
  %v225 = vsel %vm73, 1, 0
  %v226 = vsel %vm74, 1, 0
  %v227 = vsel %vm75, 1, 0
  %vm228 = vcmp.eq.s32.totalorder %v224, 1
  %vm229 = vcmp.eq.s32.totalorder %v225, 1
  %vm230 = vcmp.eq.s32.totalorder %v226, 1
  %vm231 = vcmp.eq.s32.totalorder %v227, 1
  %v232 = vsel %vm228, %v223, 0.0
  %v233 = vsel %vm229, %v222, 0.0
  %v234 = vsel %vm230, %v221, 0.0
  %v235 = vsel %vm231, %v220, 0.0
  %236 = vrot.lane.b32.xlu0 %v132, 127
  %v237 = vpop.permute.xlu0 %236
  %238 = vrot.lane.b32.xlu0 %v133, 127
  %v239 = vpop.permute.xlu0 %238
  %240 = vrot.lane.b32.xlu0 %v134, 127
  %v241 = vpop.permute.xlu0 %240
  %242 = vrot.lane.b32.xlu0 %v135, 127
  %v243 = vpop.permute.xlu0 %242
  %vm244 = vcmp.lt.s32.totalorder %v56, 127
  %v245 = vsel %vm244, %v241, %v243
  %v246 = vsel %vm244, %v239, %v241
  %v247 = vsel %vm244, %v237, %v239
  %v248 = vsel %vm244, %v243, %v237
  %v249 = vsel %vm76, 1, 0
  %v250 = vsel %vm77, 1, 0
  %v251 = vsel %vm78, 1, 0
  %v252 = vsel %vm79, 1, 0
  %vm253 = vcmp.eq.s32.totalorder %v249, 1
  %vm254 = vcmp.eq.s32.totalorder %v250, 1
  %vm255 = vcmp.eq.s32.totalorder %v251, 1
  %vm256 = vcmp.eq.s32.totalorder %v252, 1
  %v257 = vsel %vm253, %v247, 0.0
  %v258 = vsel %vm254, %v246, 0.0
  %v259 = vsel %vm255, %v245, 0.0
  %v260 = vsel %vm256, %v248, 0.0
  %261 = vrot.lane.b32.xlu0 %v132, 113
  %v262 = vpop.permute.xlu0 %261
  %263 = vrot.lane.b32.xlu0 %v133, 113
  %v264 = vpop.permute.xlu0 %263
  %265 = vrot.lane.b32.xlu0 %v134, 113
  %v266 = vpop.permute.xlu0 %265
  %267 = vrot.lane.b32.xlu0 %v135, 113
  %v268 = vpop.permute.xlu0 %267
  %vm269 = vcmp.lt.s32.totalorder %v56, 113
  %v270 = vsel %vm269, %v266, %v268
  %v271 = vsel %vm269, %v264, %v266
  %v272 = vsel %vm269, %v262, %v264
  %v273 = vsel %vm269, %v268, %v262
  %v274 = vsel %vm96, 1, 0
  %v275 = vsel %vm97, 1, 0
  %v276 = vsel %vm98, 1, 0
  %v277 = vsel %vm99, 1, 0
  %vm278 = vcmp.eq.s32.totalorder %v274, 1
  %vm279 = vcmp.eq.s32.totalorder %v275, 1
  %vm280 = vcmp.eq.s32.totalorder %v276, 1
  %vm281 = vcmp.eq.s32.totalorder %v277, 1
  %v282 = vsel %vm278, %v272, 0.0
  %v283 = vsel %vm279, %v271, 0.0
  %v284 = vsel %vm280, %v270, 0.0
  %v285 = vsel %vm281, %v273, 0.0
  %286 = vrot.lane.b32.xlu0 %v132, 112
  %v287 = vpop.permute.xlu0 %286
  %288 = vrot.lane.b32.xlu0 %v133, 112
  %v289 = vpop.permute.xlu0 %288
  %290 = vrot.lane.b32.xlu0 %v134, 112
  %v291 = vpop.permute.xlu0 %290
  %292 = vrot.lane.b32.xlu0 %v135, 112
  %v293 = vpop.permute.xlu0 %292
  %vm294 = vcmp.lt.s32.totalorder %v56, 112
  %v295 = vsel %vm294, %v291, %v293
  %v296 = vsel %vm294, %v289, %v291
  %v297 = vsel %vm294, %v287, %v289
  %v298 = vsel %vm294, %v293, %v287
  %v299 = vsel %vm84, 1, 0
  %v300 = vsel %vm85, 1, 0
  %v301 = vsel %vm86, 1, 0
  %v302 = vsel %vm87, 1, 0
  %vm303 = vcmp.eq.s32.totalorder %v299, 1
  %vm304 = vcmp.eq.s32.totalorder %v300, 1
  %vm305 = vcmp.eq.s32.totalorder %v301, 1
  %vm306 = vcmp.eq.s32.totalorder %v302, 1
  %v307 = vsel %vm303, %v297, 0.0
  %v308 = vsel %vm304, %v296, 0.0
  %v309 = vsel %vm305, %v295, 0.0
  %v310 = vsel %vm306, %v298, 0.0
  %311 = vrot.lane.b32.xlu0 %v132, 111
  %v312 = vpop.permute.xlu0 %311
  %313 = vrot.lane.b32.xlu0 %v133, 111
  %v314 = vpop.permute.xlu0 %313
  %315 = vrot.lane.b32.xlu0 %v134, 111
  %v316 = vpop.permute.xlu0 %315
  %317 = vrot.lane.b32.xlu0 %v135, 111
  %v318 = vpop.permute.xlu0 %317
  %vm319 = vcmp.lt.s32.totalorder %v56, 111
  %v320 = vsel %vm319, %v316, %v318
  %v321 = vsel %vm319, %v314, %v316
  %v322 = vsel %vm319, %v312, %v314
  %v323 = vsel %vm319, %v318, %v312
  %v324 = vsel %vm100, 1, 0
  %v325 = vsel %vm101, 1, 0
  %v326 = vsel %vm102, 1, 0
  %v327 = vsel %vm103, 1, 0
  %vm328 = vcmp.eq.s32.totalorder %v324, 1
  %vm329 = vcmp.eq.s32.totalorder %v325, 1
  %vm330 = vcmp.eq.s32.totalorder %v326, 1
  %vm331 = vcmp.eq.s32.totalorder %v327, 1
  %v332 = vsel %vm328, %v322, 0.0
  %v333 = vsel %vm329, %v321, 0.0
  %v334 = vsel %vm330, %v320, 0.0
  %v335 = vsel %vm331, %v323, 0.0
  %v340 = vrot.slane %v182, 4
  %v341 = vrot.slane %v183, 4
  %v342 = vrot.slane %v184, 4
  %v343 = vrot.slane %v185, 4
  %v352 = vrot.slane %v232, 4
  %v353 = vrot.slane %v233, 4
  %v354 = vrot.slane %v234, 4
  %v355 = vrot.slane %v235, 4
  %v364 = vrot.slane %v257, 4
  %v365 = vrot.slane %v258, 4
  %v366 = vrot.slane %v259, 4
  %v367 = vrot.slane %v260, 4
  %v376 = vrot.slane %v307, 4
  %v377 = vrot.slane %v308, 4
  %v378 = vrot.slane %v309, 4
  %v379 = vrot.slane %v310, 4
  %vm384 = vcmask 1043456
  %v385 = vsel %vm384, %v157, %v340
  %v386 = vsel %vm384, %v158, %v341
  %v387 = vsel %vm384, %v159, %v342
  %v388 = vsel %vm384, %v160, %v343
  %v389 = vsel %vm384, %v207, %v352
  %v390 = vsel %vm384, %v208, %v353
  %v391 = vsel %vm384, %v209, %v354
  %v392 = vsel %vm384, %v210, %v355
  %v393 = vsel %vm384, %v132, %v364
  %v394 = vsel %vm384, %v133, %v365
  %v395 = vsel %vm384, %v134, %v366
  %v396 = vsel %vm384, %v135, %v367
  %v397 = vsel %vm384, %v282, %v376
  %v398 = vsel %vm384, %v283, %v377
  %v399 = vsel %vm384, %v284, %v378
  %v400 = vsel %vm384, %v285, %v379
  %v401 = vpack.c.bf16 %v389, %v385
  %v402 = vpack.c.bf16 %v390, %v386
  %v403 = vpack.c.bf16 %v391, %v387
  %v404 = vpack.c.bf16 %v392, %v388
  %v405 = vpack.c.bf16 %v397, %v393
  %v406 = vpack.c.bf16 %v398, %v394
  %v407 = vpack.c.bf16 %v399, %v395
  %v408 = vpack.c.bf16 %v400, %v396
  %v409 = vpack.c.bf16 %v332, %v332
  %v410 = vpack.c.bf16 %v333, %v333
  %v411 = vpack.c.bf16 %v334, %v334
  %v412 = vpack.c.bf16 %v335, %v335
  %v413 = vld [vmem:[%s2] sm:$0xf]
  %v414 = vld [vmem:[%s2 + $0x4] sm:$0xf]
  %v415 = vld [vmem:[%s2 + $0x8] sm:$0xf]
  %v416 = vld [vmem:[%s2 + $0xc] sm:$0xf]
  %v417 = vld [vmem:[%s3] sm:$0xff]
  %v418 = vld [vmem:[%s3 + $0x8] sm:$0xff]
  %v419 = vld [vmem:[%s3 + $0x10] sm:$0xff]
  %v420 = vld [vmem:[%s3 + $0x18] sm:$0xff]
  %422 = vset.pattern.permute.xlu0 0
  %423 = vperm.xlu0 %422, %v417
  %v424 = vpop.permute.xlu0 %423
  %427 = vset.pattern.permute.xlu0 0
  %428 = vperm.xlu0 %427, %v418
  %v429 = vpop.permute.xlu0 %428
  %432 = vset.pattern.permute.xlu0 0
  %433 = vperm.xlu0 %432, %v419
  %v434 = vpop.permute.xlu0 %433
  %437 = vset.pattern.permute.xlu0 0
  %438 = vperm.xlu0 %437, %v420
  %v439 = vpop.permute.xlu0 %438
  %v445 = vunpack.c.l.b16 %v413
  %v446 = vunpack.c.l.b16 %v414
  %v447 = vunpack.c.l.b16 %v415
  %v448 = vunpack.c.l.b16 %v416
  %v449 = vpack.c.b16 %v446, %v445
  %v450 = vpack.c.b16 %v448, %v447
  %vm451 = vcmask 293888
  %v453 = vsel %vm451, %v449, 0
  %v456 = vsel %vm451, %v450, 0
  %vm458 = vcmask 1041408
  %v460 = vsel %vm458, %v409, 0
  %v463 = vsel %vm458, %v410, 0
  %v466 = vsel %vm458, %v411, 0
  %v469 = vsel %vm458, %v412, 0
  %471 = vmatprep.subr.bf16.mxu0 %v402
  %472 = vmatpush1.bf16.msra.mxu0 %v401
  %473 = vmatprep.subr.bf16.mxu0 %v406
  %474 = vmatpush1.bf16.msra.mxu0 %v405
  %475 = vmatprep.subr.bf16.mxu0 %v463
  %476 = vmatpush1.bf16.msra.mxu0 %v460
  %477 = vmatprep.subr.bf16.mxu0 0
  %478 = vmatpush1.bf16.msra.mxu0 0
  %479 = vmatprep.subr.bf16.mxu0 0
  %480 = vmatpush1.bf16.msra.mxu0 0
  %481 = vmatprep.subr.bf16.mxu0 0
  %482 = vmatpush1.bf16.msra.mxu0 0
  %483 = vmatprep.subr.bf16.mxu0 0
  %484 = vmatpush1.bf16.msra.mxu0 0
  %485 = vmatprep.subr.bf16.mxu0 0
  %486 = vmatpush1.bf16.msra.mxu0 0
  %487 = vmatprep.subr.bf16.mxu0 0
  %488 = vmatpush1.bf16.msra.mxu0 0
  %489 = vmatprep.subr.bf16.mxu0 0
  %490 = vmatpush1.bf16.msra.mxu0 0
  %491 = vmatprep.subr.bf16.mxu0 0
  %492 = vmatpush1.bf16.msra.mxu0 0
  %493 = vmatprep.subr.bf16.mxu0 0
  %494 = vmatpush1.bf16.msra.mxu0 0
  %495 = vmatprep.subr.bf16.mxu0 0
  %496 = vmatpush1.bf16.msra.mxu0 0
  %497 = vmatprep.subr.bf16.mxu0 0
  %498 = vmatpush1.bf16.msra.mxu0 0
  %499 = vmatprep.subr.bf16.mxu0 0
  %500 = vmatpush1.bf16.msra.mxu0 0
  %501 = vmatprep.subr.bf16.mxu0 0
  %502 = vmatpush1.bf16.msra.mxu0 0
  %503 = vmatprep.mubr.bf16.mxu0 0
  %504 = vmatmul.mubr.bf16.gmra.mrb[0].mxu0 %v453
  %v505 = vpop.f32.mrb[0].mxu0
  %v506 = vadd.f32 %v424, %v505
  %v507 = vpop.f32.mrb[0].mxu0
  %v508 = vadd.f32 %v424, %v507
  %v509 = vpop.f32.mrb[0].mxu0
  %v510 = vadd.f32 %v429, %v509
  %v511 = vpop.f32.mrb[0].mxu0
  %v512 = vadd.f32 %v429, %v511
  %513 = vmatprep.mubr.bf16.mxu0 0
  %514 = vmatmul.mubr.bf16.gmra.mrb[0].mxu0 %v456
  %v515 = vpop.f32.mrb[0].mxu0
  %v516 = vadd.f32 %v434, %v515
  %v517 = vpop.f32.mrb[0].mxu0
  %v518 = vadd.f32 %v434, %v517
  %v519 = vpop.f32.mrb[0].mxu0
  %v520 = vadd.f32 %v439, %v519
  %v521 = vpop.f32.mrb[0].mxu0
  %v522 = vadd.f32 %v439, %v521
  %523 = vdwg.mxu0
  %524 = vmatprep.subr.bf16.mxu0 %v404
  %525 = vmatpush1.bf16.msra.mxu0 %v403
  %526 = vmatprep.subr.bf16.mxu0 %v408
  %527 = vmatpush1.bf16.msra.mxu0 %v407
  %528 = vmatprep.subr.bf16.mxu0 %v469
  %529 = vmatpush1.bf16.msra.mxu0 %v466
  %530 = vmatprep.subr.bf16.mxu0 0
  %531 = vmatpush1.bf16.msra.mxu0 0
  %532 = vmatprep.subr.bf16.mxu0 0
  %533 = vmatpush1.bf16.msra.mxu0 0
  %534 = vmatprep.subr.bf16.mxu0 0
  %535 = vmatpush1.bf16.msra.mxu0 0
  %536 = vmatprep.subr.bf16.mxu0 0
  %537 = vmatpush1.bf16.msra.mxu0 0
  %538 = vmatprep.subr.bf16.mxu0 0
  %539 = vmatpush1.bf16.msra.mxu0 0
  %540 = vmatprep.subr.bf16.mxu0 0
  %541 = vmatpush1.bf16.msra.mxu0 0
  %542 = vmatprep.subr.bf16.mxu0 0
  %543 = vmatpush1.bf16.msra.mxu0 0
  %544 = vmatprep.subr.bf16.mxu0 0
  %545 = vmatpush1.bf16.msra.mxu0 0
  %546 = vmatprep.subr.bf16.mxu0 0
  %547 = vmatpush1.bf16.msra.mxu0 0
  %548 = vmatprep.subr.bf16.mxu0 0
  %549 = vmatpush1.bf16.msra.mxu0 0
  %550 = vmatprep.subr.bf16.mxu0 0
  %551 = vmatpush1.bf16.msra.mxu0 0
  %552 = vmatprep.subr.bf16.mxu0 0
  %553 = vmatpush1.bf16.msra.mxu0 0
  %554 = vmatprep.subr.bf16.mxu0 0
  %555 = vmatpush1.bf16.msra.mxu0 0
  %556 = vmatprep.mubr.bf16.mxu0 0
  %557 = vmatmul.mubr.bf16.gmra.mrb[0].mxu0 %v453
  %v558 = vpop.f32.mrb[0].mxu0
  %v559 = vadd.f32 %v424, %v558
  %v560 = vpop.f32.mrb[0].mxu0
  %v561 = vadd.f32 %v424, %v560
  %v562 = vpop.f32.mrb[0].mxu0
  %v563 = vadd.f32 %v429, %v562
  %v564 = vpop.f32.mrb[0].mxu0
  %v565 = vadd.f32 %v429, %v564
  %566 = vmatprep.mubr.bf16.mxu0 0
  %567 = vmatmul.mubr.bf16.gmra.mrb[0].mxu0 %v456
  %v568 = vpop.f32.mrb[0].mxu0
  %v569 = vadd.f32 %v434, %v568
  %v570 = vpop.f32.mrb[0].mxu0
  %v571 = vadd.f32 %v434, %v570
  %v572 = vpop.f32.mrb[0].mxu0
  %v573 = vadd.f32 %v439, %v572
  %v574 = vpop.f32.mrb[0].mxu0
  %v575 = vadd.f32 %v439, %v574
  %576 = vdwg.mxu0
  %v577 = vadd.f32 %v506, %v508
  %578 = vadd.xlane.f32.xlu0 %v577
  %v579 = vpop.xlane.xlu0 %578
  %v580 = vadd.f32 %v510, %v512
  %581 = vadd.xlane.f32.xlu0 %v580
  %v582 = vpop.xlane.xlu0 %581
  %v583 = vadd.f32 %v516, %v518
  %584 = vadd.xlane.f32.xlu0 %v583
  %v585 = vpop.xlane.xlu0 %584
  %v586 = vadd.f32 %v520, %v522
  %587 = vadd.xlane.f32.xlu0 %v586
  %v588 = vpop.xlane.xlu0 %587
  %v589 = vmul.f32 %v506, %v506
  %v590 = vmul.f32 %v508, %v508
  %v591 = vmul.f32 %v510, %v510
  %v592 = vmul.f32 %v512, %v512
  %v593 = vmul.f32 %v516, %v516
  %v594 = vmul.f32 %v518, %v518
  %v595 = vmul.f32 %v520, %v520
  %v596 = vmul.f32 %v522, %v522
  %v597 = vadd.f32 %v589, %v590
  %598 = vadd.xlane.f32.xlu0 %v597
  %v599 = vpop.xlane.xlu0 %598
  %v600 = vadd.f32 %v591, %v592
  %601 = vadd.xlane.f32.xlu0 %v600
  %v602 = vpop.xlane.xlu0 %601
  %v603 = vadd.f32 %v593, %v594
  %604 = vadd.xlane.f32.xlu0 %v603
  %v605 = vpop.xlane.xlu0 %604
  %v606 = vadd.f32 %v595, %v596
  %607 = vadd.xlane.f32.xlu0 %v606
  %v608 = vpop.xlane.xlu0 %607
  %v609 = vmul.f32 %v579, 0.00390625
  %v610 = vmul.f32 %v582, 0.00390625
  %v611 = vmul.f32 %v585, 0.00390625
  %v612 = vmul.f32 %v588, 0.00390625
  %v613 = vmul.f32 %v599, 0.00390625
  %v614 = vmul.f32 %v602, 0.00390625
  %v615 = vmul.f32 %v605, 0.00390625
  %v616 = vmul.f32 %v608, 0.00390625
  %v617 = vmul.f32 %v609, %v609
  %v618 = vmul.f32 %v610, %v610
  %v619 = vmul.f32 %v611, %v611
  %v620 = vmul.f32 %v612, %v612
  %v621 = vsub.f32 %v613, %v617
  %v622 = vsub.f32 %v614, %v618
  %v623 = vsub.f32 %v615, %v619
  %v624 = vsub.f32 %v616, %v620
  %v625 = vsub.f32 %v506, %v609
  %v626 = vsub.f32 %v508, %v609
  %v627 = vsub.f32 %v510, %v610
  %v628 = vsub.f32 %v512, %v610
  %v629 = vsub.f32 %v516, %v611
  %v630 = vsub.f32 %v518, %v611
  %v631 = vsub.f32 %v520, %v612
  %v632 = vsub.f32 %v522, %v612
  %v633 = vadd.f32 %v621, 1e-05
  %v634 = vadd.f32 %v622, 1e-05
  %v635 = vadd.f32 %v623, 1e-05
  %v636 = vadd.f32 %v624, 1e-05
  %v637 = vrsqrt.pop %v633
  %v638 = vrsqrt.pop %v634
  %v639 = vrsqrt.pop %v635
  %v640 = vrsqrt.pop %v636
  %v641 = vmul.f32 %v625, %v637
  %v642 = vmul.f32 %v626, %v637
  %v643 = vmul.f32 %v627, %v638
  %v644 = vmul.f32 %v628, %v638
  %v645 = vmul.f32 %v629, %v639
  %v646 = vmul.f32 %v630, %v639
  %v647 = vmul.f32 %v631, %v640
  %v648 = vmul.f32 %v632, %v640
  %v649 = vmax.f32 %v641, 0.0
  %v650 = vmax.f32 %v642, 0.0
  %v651 = vmax.f32 %v643, 0.0
  %v652 = vmax.f32 %v644, 0.0
  %v653 = vmax.f32 %v645, 0.0
  %v654 = vmax.f32 %v646, 0.0
  %v655 = vmax.f32 %v647, 0.0
  %v656 = vmax.f32 %v648, 0.0
  %v657 = vadd.f32 %v559, %v561
  %658 = vadd.xlane.f32.xlu0 %v657
  %v659 = vpop.xlane.xlu0 %658
  %v660 = vadd.f32 %v563, %v565
  %661 = vadd.xlane.f32.xlu0 %v660
  %v662 = vpop.xlane.xlu0 %661
  %v663 = vadd.f32 %v569, %v571
  %664 = vadd.xlane.f32.xlu0 %v663
  %v665 = vpop.xlane.xlu0 %664
  %v666 = vadd.f32 %v573, %v575
  %667 = vadd.xlane.f32.xlu0 %v666
  %v668 = vpop.xlane.xlu0 %667
  %v669 = vmul.f32 %v559, %v559
  %v670 = vmul.f32 %v561, %v561
  %v671 = vmul.f32 %v563, %v563
  %v672 = vmul.f32 %v565, %v565
  %v673 = vmul.f32 %v569, %v569
  %v674 = vmul.f32 %v571, %v571
  %v675 = vmul.f32 %v573, %v573
  %v676 = vmul.f32 %v575, %v575
  %v677 = vadd.f32 %v669, %v670
  %678 = vadd.xlane.f32.xlu0 %v677
  %v679 = vpop.xlane.xlu0 %678
  %v680 = vadd.f32 %v671, %v672
  %681 = vadd.xlane.f32.xlu0 %v680
  %v682 = vpop.xlane.xlu0 %681
  %v683 = vadd.f32 %v673, %v674
  %684 = vadd.xlane.f32.xlu0 %v683
  %v685 = vpop.xlane.xlu0 %684
  %v686 = vadd.f32 %v675, %v676
  %687 = vadd.xlane.f32.xlu0 %v686
  %v688 = vpop.xlane.xlu0 %687
  %v689 = vmul.f32 %v659, 0.00390625
  %v690 = vmul.f32 %v662, 0.00390625
  %v691 = vmul.f32 %v665, 0.00390625
  %v692 = vmul.f32 %v668, 0.00390625
  %v693 = vmul.f32 %v679, 0.00390625
  %v694 = vmul.f32 %v682, 0.00390625
  %v695 = vmul.f32 %v685, 0.00390625
  %v696 = vmul.f32 %v688, 0.00390625
  %v697 = vmul.f32 %v689, %v689
  %v698 = vmul.f32 %v690, %v690
  %v699 = vmul.f32 %v691, %v691
  %v700 = vmul.f32 %v692, %v692
  %v701 = vsub.f32 %v693, %v697
  %v702 = vsub.f32 %v694, %v698
  %v703 = vsub.f32 %v695, %v699
  %v704 = vsub.f32 %v696, %v700
  %v705 = vsub.f32 %v559, %v689
  %v706 = vsub.f32 %v561, %v689
  %v707 = vsub.f32 %v563, %v690
  %v708 = vsub.f32 %v565, %v690
  %v709 = vsub.f32 %v569, %v691
  %v710 = vsub.f32 %v571, %v691
  %v711 = vsub.f32 %v573, %v692
  %v712 = vsub.f32 %v575, %v692
  %v713 = vadd.f32 %v701, 1e-05
  %v714 = vadd.f32 %v702, 1e-05
  %v715 = vadd.f32 %v703, 1e-05
  %v716 = vadd.f32 %v704, 1e-05
  %v717 = vrsqrt.pop %v713
  %v718 = vrsqrt.pop %v714
  %v719 = vrsqrt.pop %v715
  %v720 = vrsqrt.pop %v716
  %v721 = vmul.f32 %v705, %v717
  %v722 = vmul.f32 %v706, %v717
  %v723 = vmul.f32 %v707, %v718
  %v724 = vmul.f32 %v708, %v718
  %v725 = vmul.f32 %v709, %v719
  %v726 = vmul.f32 %v710, %v719
  %v727 = vmul.f32 %v711, %v720
  %v728 = vmul.f32 %v712, %v720
  %v729 = vmax.f32 %v721, 0.0
  %v730 = vmax.f32 %v722, 0.0
  %v731 = vmax.f32 %v723, 0.0
  %v732 = vmax.f32 %v724, 0.0
  %v733 = vmax.f32 %v725, 0.0
  %v734 = vmax.f32 %v726, 0.0
  %v735 = vmax.f32 %v727, 0.0
  %v736 = vmax.f32 %v728, 0.0
  %737 = vrot.lane.b32.xlu0 %v649, 17
  %v738 = vpop.permute.xlu0 %737
  %739 = vrot.lane.b32.xlu0 %v651, 17
  %v740 = vpop.permute.xlu0 %739
  %741 = vrot.lane.b32.xlu0 %v653, 17
  %v742 = vpop.permute.xlu0 %741
  %743 = vrot.lane.b32.xlu0 %v655, 17
  %v744 = vpop.permute.xlu0 %743
  %745 = vrot.lane.b32.xlu0 %v650, 17
  %v746 = vpop.permute.xlu0 %745
  %747 = vrot.lane.b32.xlu0 %v652, 17
  %v748 = vpop.permute.xlu0 %747
  %749 = vrot.lane.b32.xlu0 %v654, 17
  %v750 = vpop.permute.xlu0 %749
  %751 = vrot.lane.b32.xlu0 %v656, 17
  %v752 = vpop.permute.xlu0 %751
  %753 = vrot.lane.b32.xlu0 %v729, 17
  %v754 = vpop.permute.xlu0 %753
  %755 = vrot.lane.b32.xlu0 %v731, 17
  %v756 = vpop.permute.xlu0 %755
  %757 = vrot.lane.b32.xlu0 %v733, 17
  %v758 = vpop.permute.xlu0 %757
  %759 = vrot.lane.b32.xlu0 %v735, 17
  %v760 = vpop.permute.xlu0 %759
  %761 = vrot.lane.b32.xlu0 %v730, 17
  %v762 = vpop.permute.xlu0 %761
  %763 = vrot.lane.b32.xlu0 %v732, 17
  %v764 = vpop.permute.xlu0 %763
  %765 = vrot.lane.b32.xlu0 %v734, 17
  %v766 = vpop.permute.xlu0 %765
  %767 = vrot.lane.b32.xlu0 %v736, 17
  %v768 = vpop.permute.xlu0 %767
  %v769 = vsel %vm144, %v754, %v762
  %v770 = vsel %vm144, %v756, %v764
  %v771 = vsel %vm144, %v758, %v766
  %v772 = vsel %vm144, %v760, %v768
  %v773 = vsel %vm144, %v746, %v754
  %v774 = vsel %vm144, %v748, %v756
  %v775 = vsel %vm144, %v750, %v758
  %v776 = vsel %vm144, %v752, %v760
  %v777 = vsel %vm144, %v738, %v746
  %v778 = vsel %vm144, %v740, %v748
  %v779 = vsel %vm144, %v742, %v750
  %v780 = vsel %vm144, %v744, %v752
  %v781 = vsel %vm144, %v762, %v738
  %v782 = vsel %vm144, %v764, %v740
  %v783 = vsel %vm144, %v766, %v742
  %v784 = vsel %vm144, %v768, %v744
  %v785 = vsel %vm153, %v781, 0.0
  %v786 = vsel %vm154, %v777, 0.0
  %v787 = vsel %vm155, %v773, 0.0
  %v788 = vsel %vm156, %v769, 0.0
  %v789 = vsel %vm153, %v782, 0.0
  %v790 = vsel %vm154, %v778, 0.0
  %v791 = vsel %vm155, %v774, 0.0
  %v792 = vsel %vm156, %v770, 0.0
  %v793 = vsel %vm153, %v783, 0.0
  %v794 = vsel %vm154, %v779, 0.0
  %v795 = vsel %vm155, %v775, 0.0
  %v796 = vsel %vm156, %v771, 0.0
  %v797 = vsel %vm153, %v784, 0.0
  %v798 = vsel %vm154, %v780, 0.0
  %v799 = vsel %vm155, %v776, 0.0
  %v800 = vsel %vm156, %v772, 0.0
  %801 = vrot.lane.b32.xlu0 %v649, 16
  %v802 = vpop.permute.xlu0 %801
  %803 = vrot.lane.b32.xlu0 %v651, 16
  %v804 = vpop.permute.xlu0 %803
  %805 = vrot.lane.b32.xlu0 %v653, 16
  %v806 = vpop.permute.xlu0 %805
  %807 = vrot.lane.b32.xlu0 %v655, 16
  %v808 = vpop.permute.xlu0 %807
  %809 = vrot.lane.b32.xlu0 %v650, 16
  %v810 = vpop.permute.xlu0 %809
  %811 = vrot.lane.b32.xlu0 %v652, 16
  %v812 = vpop.permute.xlu0 %811
  %813 = vrot.lane.b32.xlu0 %v654, 16
  %v814 = vpop.permute.xlu0 %813
  %815 = vrot.lane.b32.xlu0 %v656, 16
  %v816 = vpop.permute.xlu0 %815
  %817 = vrot.lane.b32.xlu0 %v729, 16
  %v818 = vpop.permute.xlu0 %817
  %819 = vrot.lane.b32.xlu0 %v731, 16
  %v820 = vpop.permute.xlu0 %819
  %821 = vrot.lane.b32.xlu0 %v733, 16
  %v822 = vpop.permute.xlu0 %821
  %823 = vrot.lane.b32.xlu0 %v735, 16
  %v824 = vpop.permute.xlu0 %823
  %825 = vrot.lane.b32.xlu0 %v730, 16
  %v826 = vpop.permute.xlu0 %825
  %827 = vrot.lane.b32.xlu0 %v732, 16
  %v828 = vpop.permute.xlu0 %827
  %829 = vrot.lane.b32.xlu0 %v734, 16
  %v830 = vpop.permute.xlu0 %829
  %831 = vrot.lane.b32.xlu0 %v736, 16
  %v832 = vpop.permute.xlu0 %831
  %v833 = vsel %vm169, %v818, %v826
  %v834 = vsel %vm169, %v820, %v828
  %v835 = vsel %vm169, %v822, %v830
  %v836 = vsel %vm169, %v824, %v832
  %v837 = vsel %vm169, %v810, %v818
  %v838 = vsel %vm169, %v812, %v820
  %v839 = vsel %vm169, %v814, %v822
  %v840 = vsel %vm169, %v816, %v824
  %v841 = vsel %vm169, %v802, %v810
  %v842 = vsel %vm169, %v804, %v812
  %v843 = vsel %vm169, %v806, %v814
  %v844 = vsel %vm169, %v808, %v816
  %v845 = vsel %vm169, %v826, %v802
  %v846 = vsel %vm169, %v828, %v804
  %v847 = vsel %vm169, %v830, %v806
  %v848 = vsel %vm169, %v832, %v808
  %v849 = vsel %vm178, %v845, 0.0
  %v850 = vsel %vm179, %v841, 0.0
  %v851 = vsel %vm180, %v837, 0.0
  %v852 = vsel %vm181, %v833, 0.0
  %v853 = vsel %vm178, %v846, 0.0
  %v854 = vsel %vm179, %v842, 0.0
  %v855 = vsel %vm180, %v838, 0.0
  %v856 = vsel %vm181, %v834, 0.0
  %v857 = vsel %vm178, %v847, 0.0
  %v858 = vsel %vm179, %v843, 0.0
  %v859 = vsel %vm180, %v839, 0.0
  %v860 = vsel %vm181, %v835, 0.0
  %v861 = vsel %vm178, %v848, 0.0
  %v862 = vsel %vm179, %v844, 0.0
  %v863 = vsel %vm180, %v840, 0.0
  %v864 = vsel %vm181, %v836, 0.0
  %865 = vrot.lane.b32.xlu0 %v649, 15
  %v866 = vpop.permute.xlu0 %865
  %867 = vrot.lane.b32.xlu0 %v651, 15
  %v868 = vpop.permute.xlu0 %867
  %869 = vrot.lane.b32.xlu0 %v653, 15
  %v870 = vpop.permute.xlu0 %869
  %871 = vrot.lane.b32.xlu0 %v655, 15
  %v872 = vpop.permute.xlu0 %871
  %873 = vrot.lane.b32.xlu0 %v650, 15
  %v874 = vpop.permute.xlu0 %873
  %875 = vrot.lane.b32.xlu0 %v652, 15
  %v876 = vpop.permute.xlu0 %875
  %877 = vrot.lane.b32.xlu0 %v654, 15
  %v878 = vpop.permute.xlu0 %877
  %879 = vrot.lane.b32.xlu0 %v656, 15
  %v880 = vpop.permute.xlu0 %879
  %881 = vrot.lane.b32.xlu0 %v729, 15
  %v882 = vpop.permute.xlu0 %881
  %883 = vrot.lane.b32.xlu0 %v731, 15
  %v884 = vpop.permute.xlu0 %883
  %885 = vrot.lane.b32.xlu0 %v733, 15
  %v886 = vpop.permute.xlu0 %885
  %887 = vrot.lane.b32.xlu0 %v735, 15
  %v888 = vpop.permute.xlu0 %887
  %889 = vrot.lane.b32.xlu0 %v730, 15
  %v890 = vpop.permute.xlu0 %889
  %891 = vrot.lane.b32.xlu0 %v732, 15
  %v892 = vpop.permute.xlu0 %891
  %893 = vrot.lane.b32.xlu0 %v734, 15
  %v894 = vpop.permute.xlu0 %893
  %895 = vrot.lane.b32.xlu0 %v736, 15
  %v896 = vpop.permute.xlu0 %895
  %v897 = vsel %vm194, %v882, %v890
  %v898 = vsel %vm194, %v884, %v892
  %v899 = vsel %vm194, %v886, %v894
  %v900 = vsel %vm194, %v888, %v896
  %v901 = vsel %vm194, %v874, %v882
  %v902 = vsel %vm194, %v876, %v884
  %v903 = vsel %vm194, %v878, %v886
  %v904 = vsel %vm194, %v880, %v888
  %v905 = vsel %vm194, %v866, %v874
  %v906 = vsel %vm194, %v868, %v876
  %v907 = vsel %vm194, %v870, %v878
  %v908 = vsel %vm194, %v872, %v880
  %v909 = vsel %vm194, %v890, %v866
  %v910 = vsel %vm194, %v892, %v868
  %v911 = vsel %vm194, %v894, %v870
  %v912 = vsel %vm194, %v896, %v872
  %v913 = vsel %vm203, %v909, 0.0
  %v914 = vsel %vm204, %v905, 0.0
  %v915 = vsel %vm205, %v901, 0.0
  %v916 = vsel %vm206, %v897, 0.0
  %v917 = vsel %vm203, %v910, 0.0
  %v918 = vsel %vm204, %v906, 0.0
  %v919 = vsel %vm205, %v902, 0.0
  %v920 = vsel %vm206, %v898, 0.0
  %v921 = vsel %vm203, %v911, 0.0
  %v922 = vsel %vm204, %v907, 0.0
  %v923 = vsel %vm205, %v903, 0.0
  %v924 = vsel %vm206, %v899, 0.0
  %v925 = vsel %vm203, %v912, 0.0
  %v926 = vsel %vm204, %v908, 0.0
  %v927 = vsel %vm205, %v904, 0.0
  %v928 = vsel %vm206, %v900, 0.0
  %929 = vrot.lane.b32.xlu0 %v649, 1
  %v930 = vpop.permute.xlu0 %929
  %931 = vrot.lane.b32.xlu0 %v651, 1
  %v932 = vpop.permute.xlu0 %931
  %933 = vrot.lane.b32.xlu0 %v653, 1
  %v934 = vpop.permute.xlu0 %933
  %935 = vrot.lane.b32.xlu0 %v655, 1
  %v936 = vpop.permute.xlu0 %935
  %937 = vrot.lane.b32.xlu0 %v650, 1
  %v938 = vpop.permute.xlu0 %937
  %939 = vrot.lane.b32.xlu0 %v652, 1
  %v940 = vpop.permute.xlu0 %939
  %941 = vrot.lane.b32.xlu0 %v654, 1
  %v942 = vpop.permute.xlu0 %941
  %943 = vrot.lane.b32.xlu0 %v656, 1
  %v944 = vpop.permute.xlu0 %943
  %945 = vrot.lane.b32.xlu0 %v729, 1
  %v946 = vpop.permute.xlu0 %945
  %947 = vrot.lane.b32.xlu0 %v731, 1
  %v948 = vpop.permute.xlu0 %947
  %949 = vrot.lane.b32.xlu0 %v733, 1
  %v950 = vpop.permute.xlu0 %949
  %951 = vrot.lane.b32.xlu0 %v735, 1
  %v952 = vpop.permute.xlu0 %951
  %953 = vrot.lane.b32.xlu0 %v730, 1
  %v954 = vpop.permute.xlu0 %953
  %955 = vrot.lane.b32.xlu0 %v732, 1
  %v956 = vpop.permute.xlu0 %955
  %957 = vrot.lane.b32.xlu0 %v734, 1
  %v958 = vpop.permute.xlu0 %957
  %959 = vrot.lane.b32.xlu0 %v736, 1
  %v960 = vpop.permute.xlu0 %959
  %v961 = vsel %vm219, %v946, %v954
  %v962 = vsel %vm219, %v948, %v956
  %v963 = vsel %vm219, %v950, %v958
  %v964 = vsel %vm219, %v952, %v960
  %v965 = vsel %vm219, %v938, %v946
  %v966 = vsel %vm219, %v940, %v948
  %v967 = vsel %vm219, %v942, %v950
  %v968 = vsel %vm219, %v944, %v952
  %v969 = vsel %vm219, %v930, %v938
  %v970 = vsel %vm219, %v932, %v940
  %v971 = vsel %vm219, %v934, %v942
  %v972 = vsel %vm219, %v936, %v944
  %v973 = vsel %vm219, %v954, %v930
  %v974 = vsel %vm219, %v956, %v932
  %v975 = vsel %vm219, %v958, %v934
  %v976 = vsel %vm219, %v960, %v936
  %v977 = vsel %vm228, %v973, 0.0
  %v978 = vsel %vm229, %v969, 0.0
  %v979 = vsel %vm230, %v965, 0.0
  %v980 = vsel %vm231, %v961, 0.0
  %v981 = vsel %vm228, %v974, 0.0
  %v982 = vsel %vm229, %v970, 0.0
  %v983 = vsel %vm230, %v966, 0.0
  %v984 = vsel %vm231, %v962, 0.0
  %v985 = vsel %vm228, %v975, 0.0
  %v986 = vsel %vm229, %v971, 0.0
  %v987 = vsel %vm230, %v967, 0.0
  %v988 = vsel %vm231, %v963, 0.0
  %v989 = vsel %vm228, %v976, 0.0
  %v990 = vsel %vm229, %v972, 0.0
  %v991 = vsel %vm230, %v968, 0.0
  %v992 = vsel %vm231, %v964, 0.0
  %993 = vrot.lane.b32.xlu0 %v649, 127
  %v994 = vpop.permute.xlu0 %993
  %995 = vrot.lane.b32.xlu0 %v651, 127
  %v996 = vpop.permute.xlu0 %995
  %997 = vrot.lane.b32.xlu0 %v653, 127
  %v998 = vpop.permute.xlu0 %997
  %999 = vrot.lane.b32.xlu0 %v655, 127
  %v1000 = vpop.permute.xlu0 %999
  %1001 = vrot.lane.b32.xlu0 %v650, 127
  %v1002 = vpop.permute.xlu0 %1001
  %1003 = vrot.lane.b32.xlu0 %v652, 127
  %v1004 = vpop.permute.xlu0 %1003
  %1005 = vrot.lane.b32.xlu0 %v654, 127
  %v1006 = vpop.permute.xlu0 %1005
  %1007 = vrot.lane.b32.xlu0 %v656, 127
  %v1008 = vpop.permute.xlu0 %1007
  %1009 = vrot.lane.b32.xlu0 %v729, 127
  %v1010 = vpop.permute.xlu0 %1009
  %1011 = vrot.lane.b32.xlu0 %v731, 127
  %v1012 = vpop.permute.xlu0 %1011
  %1013 = vrot.lane.b32.xlu0 %v733, 127
  %v1014 = vpop.permute.xlu0 %1013
  %1015 = vrot.lane.b32.xlu0 %v735, 127
  %v1016 = vpop.permute.xlu0 %1015
  %1017 = vrot.lane.b32.xlu0 %v730, 127
  %v1018 = vpop.permute.xlu0 %1017
  %1019 = vrot.lane.b32.xlu0 %v732, 127
  %v1020 = vpop.permute.xlu0 %1019
  %1021 = vrot.lane.b32.xlu0 %v734, 127
  %v1022 = vpop.permute.xlu0 %1021
  %1023 = vrot.lane.b32.xlu0 %v736, 127
  %v1024 = vpop.permute.xlu0 %1023
  %v1025 = vsel %vm244, %v1010, %v1018
  %v1026 = vsel %vm244, %v1012, %v1020
  %v1027 = vsel %vm244, %v1014, %v1022
  %v1028 = vsel %vm244, %v1016, %v1024
  %v1029 = vsel %vm244, %v1002, %v1010
  %v1030 = vsel %vm244, %v1004, %v1012
  %v1031 = vsel %vm244, %v1006, %v1014
  %v1032 = vsel %vm244, %v1008, %v1016
  %v1033 = vsel %vm244, %v994, %v1002
  %v1034 = vsel %vm244, %v996, %v1004
  %v1035 = vsel %vm244, %v998, %v1006
  %v1036 = vsel %vm244, %v1000, %v1008
  %v1037 = vsel %vm244, %v1018, %v994
  %v1038 = vsel %vm244, %v1020, %v996
  %v1039 = vsel %vm244, %v1022, %v998
  %v1040 = vsel %vm244, %v1024, %v1000
  %v1041 = vsel %vm253, %v1033, 0.0
  %v1042 = vsel %vm254, %v1029, 0.0
  %v1043 = vsel %vm255, %v1025, 0.0
  %v1044 = vsel %vm256, %v1037, 0.0
  %v1045 = vsel %vm253, %v1034, 0.0
  %v1046 = vsel %vm254, %v1030, 0.0
  %v1047 = vsel %vm255, %v1026, 0.0
  %v1048 = vsel %vm256, %v1038, 0.0
  %v1049 = vsel %vm253, %v1035, 0.0
  %v1050 = vsel %vm254, %v1031, 0.0
  %v1051 = vsel %vm255, %v1027, 0.0
  %v1052 = vsel %vm256, %v1039, 0.0
  %v1053 = vsel %vm253, %v1036, 0.0
  %v1054 = vsel %vm254, %v1032, 0.0
  %v1055 = vsel %vm255, %v1028, 0.0
  %v1056 = vsel %vm256, %v1040, 0.0
  %1057 = vrot.lane.b32.xlu0 %v649, 113
  %v1058 = vpop.permute.xlu0 %1057
  %1059 = vrot.lane.b32.xlu0 %v651, 113
  %v1060 = vpop.permute.xlu0 %1059
  %1061 = vrot.lane.b32.xlu0 %v653, 113
  %v1062 = vpop.permute.xlu0 %1061
  %1063 = vrot.lane.b32.xlu0 %v655, 113
  %v1064 = vpop.permute.xlu0 %1063
  %1065 = vrot.lane.b32.xlu0 %v650, 113
  %v1066 = vpop.permute.xlu0 %1065
  %1067 = vrot.lane.b32.xlu0 %v652, 113
  %v1068 = vpop.permute.xlu0 %1067
  %1069 = vrot.lane.b32.xlu0 %v654, 113
  %v1070 = vpop.permute.xlu0 %1069
  %1071 = vrot.lane.b32.xlu0 %v656, 113
  %v1072 = vpop.permute.xlu0 %1071
  %1073 = vrot.lane.b32.xlu0 %v729, 113
  %v1074 = vpop.permute.xlu0 %1073
  %1075 = vrot.lane.b32.xlu0 %v731, 113
  %v1076 = vpop.permute.xlu0 %1075
  %1077 = vrot.lane.b32.xlu0 %v733, 113
  %v1078 = vpop.permute.xlu0 %1077
  %1079 = vrot.lane.b32.xlu0 %v735, 113
  %v1080 = vpop.permute.xlu0 %1079
  %1081 = vrot.lane.b32.xlu0 %v730, 113
  %v1082 = vpop.permute.xlu0 %1081
  %1083 = vrot.lane.b32.xlu0 %v732, 113
  %v1084 = vpop.permute.xlu0 %1083
  %1085 = vrot.lane.b32.xlu0 %v734, 113
  %v1086 = vpop.permute.xlu0 %1085
  %1087 = vrot.lane.b32.xlu0 %v736, 113
  %v1088 = vpop.permute.xlu0 %1087
  %v1089 = vsel %vm269, %v1074, %v1082
  %v1090 = vsel %vm269, %v1076, %v1084
  %v1091 = vsel %vm269, %v1078, %v1086
  %v1092 = vsel %vm269, %v1080, %v1088
  %v1093 = vsel %vm269, %v1066, %v1074
  %v1094 = vsel %vm269, %v1068, %v1076
  %v1095 = vsel %vm269, %v1070, %v1078
  %v1096 = vsel %vm269, %v1072, %v1080
  %v1097 = vsel %vm269, %v1058, %v1066
  %v1098 = vsel %vm269, %v1060, %v1068
  %v1099 = vsel %vm269, %v1062, %v1070
  %v1100 = vsel %vm269, %v1064, %v1072
  %v1101 = vsel %vm269, %v1082, %v1058
  %v1102 = vsel %vm269, %v1084, %v1060
  %v1103 = vsel %vm269, %v1086, %v1062
  %v1104 = vsel %vm269, %v1088, %v1064
  %v1105 = vsel %vm278, %v1097, 0.0
  %v1106 = vsel %vm279, %v1093, 0.0
  %v1107 = vsel %vm280, %v1089, 0.0
  %v1108 = vsel %vm281, %v1101, 0.0
  %v1109 = vsel %vm278, %v1098, 0.0
  %v1110 = vsel %vm279, %v1094, 0.0
  %v1111 = vsel %vm280, %v1090, 0.0
  %v1112 = vsel %vm281, %v1102, 0.0
  %v1113 = vsel %vm278, %v1099, 0.0
  %v1114 = vsel %vm279, %v1095, 0.0
  %v1115 = vsel %vm280, %v1091, 0.0
  %v1116 = vsel %vm281, %v1103, 0.0
  %v1117 = vsel %vm278, %v1100, 0.0
  %v1118 = vsel %vm279, %v1096, 0.0
  %v1119 = vsel %vm280, %v1092, 0.0
  %v1120 = vsel %vm281, %v1104, 0.0
  %1121 = vrot.lane.b32.xlu0 %v649, 112
  %v1122 = vpop.permute.xlu0 %1121
  %1123 = vrot.lane.b32.xlu0 %v651, 112
  %v1124 = vpop.permute.xlu0 %1123
  %1125 = vrot.lane.b32.xlu0 %v653, 112
  %v1126 = vpop.permute.xlu0 %1125
  %1127 = vrot.lane.b32.xlu0 %v655, 112
  %v1128 = vpop.permute.xlu0 %1127
  %1129 = vrot.lane.b32.xlu0 %v650, 112
  %v1130 = vpop.permute.xlu0 %1129
  %1131 = vrot.lane.b32.xlu0 %v652, 112
  %v1132 = vpop.permute.xlu0 %1131
  %1133 = vrot.lane.b32.xlu0 %v654, 112
  %v1134 = vpop.permute.xlu0 %1133
  %1135 = vrot.lane.b32.xlu0 %v656, 112
  %v1136 = vpop.permute.xlu0 %1135
  %1137 = vrot.lane.b32.xlu0 %v729, 112
  %v1138 = vpop.permute.xlu0 %1137
  %1139 = vrot.lane.b32.xlu0 %v731, 112
  %v1140 = vpop.permute.xlu0 %1139
  %1141 = vrot.lane.b32.xlu0 %v733, 112
  %v1142 = vpop.permute.xlu0 %1141
  %1143 = vrot.lane.b32.xlu0 %v735, 112
  %v1144 = vpop.permute.xlu0 %1143
  %1145 = vrot.lane.b32.xlu0 %v730, 112
  %v1146 = vpop.permute.xlu0 %1145
  %1147 = vrot.lane.b32.xlu0 %v732, 112
  %v1148 = vpop.permute.xlu0 %1147
  %1149 = vrot.lane.b32.xlu0 %v734, 112
  %v1150 = vpop.permute.xlu0 %1149
  %1151 = vrot.lane.b32.xlu0 %v736, 112
  %v1152 = vpop.permute.xlu0 %1151
  %v1153 = vsel %vm294, %v1138, %v1146
  %v1154 = vsel %vm294, %v1140, %v1148
  %v1155 = vsel %vm294, %v1142, %v1150
  %v1156 = vsel %vm294, %v1144, %v1152
  %v1157 = vsel %vm294, %v1130, %v1138
  %v1158 = vsel %vm294, %v1132, %v1140
  %v1159 = vsel %vm294, %v1134, %v1142
  %v1160 = vsel %vm294, %v1136, %v1144
  %v1161 = vsel %vm294, %v1122, %v1130
  %v1162 = vsel %vm294, %v1124, %v1132
  %v1163 = vsel %vm294, %v1126, %v1134
  %v1164 = vsel %vm294, %v1128, %v1136
  %v1165 = vsel %vm294, %v1146, %v1122
  %v1166 = vsel %vm294, %v1148, %v1124
  %v1167 = vsel %vm294, %v1150, %v1126
  %v1168 = vsel %vm294, %v1152, %v1128
  %v1169 = vsel %vm303, %v1161, 0.0
  %v1170 = vsel %vm304, %v1157, 0.0
  %v1171 = vsel %vm305, %v1153, 0.0
  %v1172 = vsel %vm306, %v1165, 0.0
  %v1173 = vsel %vm303, %v1162, 0.0
  %v1174 = vsel %vm304, %v1158, 0.0
  %v1175 = vsel %vm305, %v1154, 0.0
  %v1176 = vsel %vm306, %v1166, 0.0
  %v1177 = vsel %vm303, %v1163, 0.0
  %v1178 = vsel %vm304, %v1159, 0.0
  %v1179 = vsel %vm305, %v1155, 0.0
  %v1180 = vsel %vm306, %v1167, 0.0
  %v1181 = vsel %vm303, %v1164, 0.0
  %v1182 = vsel %vm304, %v1160, 0.0
  %v1183 = vsel %vm305, %v1156, 0.0
  %v1184 = vsel %vm306, %v1168, 0.0
  %1185 = vrot.lane.b32.xlu0 %v649, 111
  %v1186 = vpop.permute.xlu0 %1185
  %1187 = vrot.lane.b32.xlu0 %v651, 111
  %v1188 = vpop.permute.xlu0 %1187
  %1189 = vrot.lane.b32.xlu0 %v653, 111
  %v1190 = vpop.permute.xlu0 %1189
  %1191 = vrot.lane.b32.xlu0 %v655, 111
  %v1192 = vpop.permute.xlu0 %1191
  %1193 = vrot.lane.b32.xlu0 %v650, 111
  %v1194 = vpop.permute.xlu0 %1193
  %1195 = vrot.lane.b32.xlu0 %v652, 111
  %v1196 = vpop.permute.xlu0 %1195
  %1197 = vrot.lane.b32.xlu0 %v654, 111
  %v1198 = vpop.permute.xlu0 %1197
  %1199 = vrot.lane.b32.xlu0 %v656, 111
  %v1200 = vpop.permute.xlu0 %1199
  %1201 = vrot.lane.b32.xlu0 %v729, 111
  %v1202 = vpop.permute.xlu0 %1201
  %1203 = vrot.lane.b32.xlu0 %v731, 111
  %v1204 = vpop.permute.xlu0 %1203
  %1205 = vrot.lane.b32.xlu0 %v733, 111
  %v1206 = vpop.permute.xlu0 %1205
  %1207 = vrot.lane.b32.xlu0 %v735, 111
  %v1208 = vpop.permute.xlu0 %1207
  %1209 = vrot.lane.b32.xlu0 %v730, 111
  %v1210 = vpop.permute.xlu0 %1209
  %1211 = vrot.lane.b32.xlu0 %v732, 111
  %v1212 = vpop.permute.xlu0 %1211
  %1213 = vrot.lane.b32.xlu0 %v734, 111
  %v1214 = vpop.permute.xlu0 %1213
  %1215 = vrot.lane.b32.xlu0 %v736, 111
  %v1216 = vpop.permute.xlu0 %1215
  %v1217 = vsel %vm319, %v1202, %v1210
  %v1218 = vsel %vm319, %v1204, %v1212
  %v1219 = vsel %vm319, %v1206, %v1214
  %v1220 = vsel %vm319, %v1208, %v1216
  %v1221 = vsel %vm319, %v1194, %v1202
  %v1222 = vsel %vm319, %v1196, %v1204
  %v1223 = vsel %vm319, %v1198, %v1206
  %v1224 = vsel %vm319, %v1200, %v1208
  %v1225 = vsel %vm319, %v1186, %v1194
  %v1226 = vsel %vm319, %v1188, %v1196
  %v1227 = vsel %vm319, %v1190, %v1198
  %v1228 = vsel %vm319, %v1192, %v1200
  %v1229 = vsel %vm319, %v1210, %v1186
  %v1230 = vsel %vm319, %v1212, %v1188
  %v1231 = vsel %vm319, %v1214, %v1190
  %v1232 = vsel %vm319, %v1216, %v1192
  %v1233 = vsel %vm328, %v1225, 0.0
  %v1234 = vsel %vm329, %v1221, 0.0
  %v1235 = vsel %vm330, %v1217, 0.0
  %v1236 = vsel %vm331, %v1229, 0.0
  %v1237 = vsel %vm328, %v1226, 0.0
  %v1238 = vsel %vm329, %v1222, 0.0
  %v1239 = vsel %vm330, %v1218, 0.0
  %v1240 = vsel %vm331, %v1230, 0.0
  %v1241 = vsel %vm328, %v1227, 0.0
  %v1242 = vsel %vm329, %v1223, 0.0
  %v1243 = vsel %vm330, %v1219, 0.0
  %v1244 = vsel %vm331, %v1231, 0.0
  %v1245 = vsel %vm328, %v1228, 0.0
  %v1246 = vsel %vm329, %v1224, 0.0
  %v1247 = vsel %vm330, %v1220, 0.0
  %v1248 = vsel %vm331, %v1232, 0.0
  %v1249 = vpack.c.bf16 %v789, %v785
  %v1250 = vpack.c.bf16 %v790, %v786
  %v1251 = vpack.c.bf16 %v791, %v787
  %v1252 = vpack.c.bf16 %v792, %v788
  %v1253 = vpack.c.bf16 %v797, %v793
  %v1254 = vpack.c.bf16 %v798, %v794
  %v1255 = vpack.c.bf16 %v799, %v795
  %v1256 = vpack.c.bf16 %v800, %v796
  %v1257 = vpack.c.bf16 %v853, %v849
  %v1258 = vpack.c.bf16 %v854, %v850
  %v1259 = vpack.c.bf16 %v855, %v851
  %v1260 = vpack.c.bf16 %v856, %v852
  %v1261 = vpack.c.bf16 %v861, %v857
  %v1262 = vpack.c.bf16 %v862, %v858
  %v1263 = vpack.c.bf16 %v863, %v859
  %v1264 = vpack.c.bf16 %v864, %v860
  %v1265 = vpack.c.bf16 %v917, %v913
  %v1266 = vpack.c.bf16 %v918, %v914
  %v1267 = vpack.c.bf16 %v919, %v915
  %v1268 = vpack.c.bf16 %v920, %v916
  %v1269 = vpack.c.bf16 %v925, %v921
  %v1270 = vpack.c.bf16 %v926, %v922
  %v1271 = vpack.c.bf16 %v927, %v923
  %v1272 = vpack.c.bf16 %v928, %v924
  %v1273 = vpack.c.bf16 %v981, %v977
  %v1274 = vpack.c.bf16 %v982, %v978
  %v1275 = vpack.c.bf16 %v983, %v979
  %v1276 = vpack.c.bf16 %v984, %v980
  %v1277 = vpack.c.bf16 %v989, %v985
  %v1278 = vpack.c.bf16 %v990, %v986
  %v1279 = vpack.c.bf16 %v991, %v987
  %v1280 = vpack.c.bf16 %v992, %v988
  %v1281 = vpack.c.bf16 %v651, %v649
  %v1282 = vpack.c.bf16 %v652, %v650
  %v1283 = vpack.c.bf16 %v731, %v729
  %v1284 = vpack.c.bf16 %v732, %v730
  %v1285 = vpack.c.bf16 %v655, %v653
  %v1286 = vpack.c.bf16 %v656, %v654
  %v1287 = vpack.c.bf16 %v735, %v733
  %v1288 = vpack.c.bf16 %v736, %v734
  %v1289 = vpack.c.bf16 %v1045, %v1041
  %v1290 = vpack.c.bf16 %v1046, %v1042
  %v1291 = vpack.c.bf16 %v1047, %v1043
  %v1292 = vpack.c.bf16 %v1048, %v1044
  %v1293 = vpack.c.bf16 %v1053, %v1049
  %v1294 = vpack.c.bf16 %v1054, %v1050
  %v1295 = vpack.c.bf16 %v1055, %v1051
  %v1296 = vpack.c.bf16 %v1056, %v1052
  %v1297 = vpack.c.bf16 %v1109, %v1105
  %v1298 = vpack.c.bf16 %v1110, %v1106
  %v1299 = vpack.c.bf16 %v1111, %v1107
  %v1300 = vpack.c.bf16 %v1112, %v1108
  %v1301 = vpack.c.bf16 %v1117, %v1113
  %v1302 = vpack.c.bf16 %v1118, %v1114
  %v1303 = vpack.c.bf16 %v1119, %v1115
  %v1304 = vpack.c.bf16 %v1120, %v1116
  %v1305 = vpack.c.bf16 %v1173, %v1169
  %v1306 = vpack.c.bf16 %v1174, %v1170
  %v1307 = vpack.c.bf16 %v1175, %v1171
  %v1308 = vpack.c.bf16 %v1176, %v1172
  %v1309 = vpack.c.bf16 %v1181, %v1177
  %v1310 = vpack.c.bf16 %v1182, %v1178
  %v1311 = vpack.c.bf16 %v1183, %v1179
  %v1312 = vpack.c.bf16 %v1184, %v1180
  %v1313 = vpack.c.bf16 %v1237, %v1233
  %v1314 = vpack.c.bf16 %v1238, %v1234
  %v1315 = vpack.c.bf16 %v1239, %v1235
  %v1316 = vpack.c.bf16 %v1240, %v1236
  %v1317 = vpack.c.bf16 %v1245, %v1241
  %v1318 = vpack.c.bf16 %v1246, %v1242
  %v1319 = vpack.c.bf16 %v1247, %v1243
  %v1320 = vpack.c.bf16 %v1248, %v1244
  %v1321 = vld [vmem:[%s4] sm:$0x3f]
  %v1322 = vld [vmem:[%s5] sm:$0x7]
  %1324 = vset.pattern.permute.xlu0 0
  %1325 = vperm.xlu0 %1324, %v1322
  %v1326 = vpop.permute.xlu0 %1325
  %v1329 = vcombine.high %v1321, %v1321
  %v1331 = vunpack.c.l.s4 1983009808
  %v1332 = vunpack.c.0.s8 %v1331
  %v1333 = vlaneseq
  %v1334 = vshrl.u32 %v1333, 7
  %v1335 = vsub.s32 %v1332, %v1334
  %v1336 = vrot.slane %v1321, %v1335
  %v1338 = vunpack.c.l.s4 1983009808
  %v1339 = vunpack.c.0.s8 %v1338
  %v1340 = vlaneseq
  %v1341 = vshrl.u32 %v1340, 7
  %v1342 = vsub.s32 %v1339, %v1341
  %v1343 = vrot.slane %v1329, %v1342
  %v1344 = vcombine.high %v1336, %v1336
  %vm1347 = vcmask 261120
  %v1349 = vsel %vm1347, %v1343, 0
  %1351 = vmatprep.subr.bf16.mxu0 %v1250
  %1352 = vmatpush1.bf16.msra.mxu0 %v1249
  %1353 = vmatprep.subr.bf16.mxu0 %v1254
  %1354 = vmatpush1.bf16.msra.mxu0 %v1253
  %1355 = vmatprep.subr.bf16.mxu0 %v1258
  %1356 = vmatpush1.bf16.msra.mxu0 %v1257
  %1357 = vmatprep.subr.bf16.mxu0 %v1262
  %1358 = vmatpush1.bf16.msra.mxu0 %v1261
  %1359 = vmatprep.subr.bf16.mxu0 %v1266
  %1360 = vmatpush1.bf16.msra.mxu0 %v1265
  %1361 = vmatprep.subr.bf16.mxu0 %v1270
  %1362 = vmatpush1.bf16.msra.mxu0 %v1269
  %1363 = vmatprep.subr.bf16.mxu0 %v1274
  %1364 = vmatpush1.bf16.msra.mxu0 %v1273
  %1365 = vmatprep.subr.bf16.mxu0 %v1278
  %1366 = vmatpush1.bf16.msra.mxu0 %v1277
  %1367 = vmatprep.subr.bf16.mxu0 %v1282
  %1368 = vmatpush1.bf16.msra.mxu0 %v1281
  %1369 = vmatprep.subr.bf16.mxu0 %v1286
  %1370 = vmatpush1.bf16.msra.mxu0 %v1285
  %1371 = vmatprep.subr.bf16.mxu0 %v1290
  %1372 = vmatpush1.bf16.msra.mxu0 %v1289
  %1373 = vmatprep.subr.bf16.mxu0 %v1294
  %1374 = vmatpush1.bf16.msra.mxu0 %v1293
  %1375 = vmatprep.subr.bf16.mxu0 %v1298
  %1376 = vmatpush1.bf16.msra.mxu0 %v1297
  %1377 = vmatprep.subr.bf16.mxu0 %v1302
  %1378 = vmatpush1.bf16.msra.mxu0 %v1301
  %1379 = vmatprep.subr.bf16.mxu0 %v1306
  %1380 = vmatpush1.bf16.msra.mxu0 %v1305
  %1381 = vmatprep.subr.bf16.mxu0 %v1310
  %1382 = vmatpush1.bf16.msra.mxu0 %v1309
  %1383 = vmatprep.mubr.bf16.mxu0 %v1344
  %1384 = vmatmul.mubr.bf16.gmra.mrb[0].mxu0 %v1336
  %v1385 = vpop.f32.mrb[0].mxu0
  %v1386 = vadd.f32 %v1326, %v1385
  %v1387 = vpop.f32.mrb[0].mxu0
  %v1388 = vadd.f32 %v1326, %v1387
  %v1389 = vpop.f32.mrb[0].mxu0
  %v1390 = vpop.f32.mrb[0].mxu0
  %1391 = vdwg.mxu0
  %1392 = vmatprep.subr.bf16.mxu0 %v1314
  %1393 = vmatpush1.bf16.msra.mxu0 %v1313
  %1394 = vmatprep.subr.bf16.mxu0 %v1318
  %1395 = vmatpush1.bf16.msra.mxu0 %v1317
  %1396 = vmatprep.subr.bf16.mxu0 0
  %1397 = vmatpush1.bf16.msra.mxu0 0
  %1398 = vmatprep.subr.bf16.mxu0 0
  %1399 = vmatpush1.bf16.msra.mxu0 0
  %1400 = vmatprep.subr.bf16.mxu0 0
  %1401 = vmatpush1.bf16.msra.mxu0 0
  %1402 = vmatprep.subr.bf16.mxu0 0
  %1403 = vmatpush1.bf16.msra.mxu0 0
  %1404 = vmatprep.subr.bf16.mxu0 0
  %1405 = vmatpush1.bf16.msra.mxu0 0
  %1406 = vmatprep.subr.bf16.mxu0 0
  %1407 = vmatpush1.bf16.msra.mxu0 0
  %1408 = vmatprep.subr.bf16.mxu0 0
  %1409 = vmatpush1.bf16.msra.mxu0 0
  %1410 = vmatprep.subr.bf16.mxu0 0
  %1411 = vmatpush1.bf16.msra.mxu0 0
  %1412 = vmatprep.subr.bf16.mxu0 0
  %1413 = vmatpush1.bf16.msra.mxu0 0
  %1414 = vmatprep.subr.bf16.mxu0 0
  %1415 = vmatpush1.bf16.msra.mxu0 0
  %1416 = vmatprep.subr.bf16.mxu0 0
  %1417 = vmatpush1.bf16.msra.mxu0 0
  %1418 = vmatprep.subr.bf16.mxu0 0
  %1419 = vmatpush1.bf16.msra.mxu0 0
  %1420 = vmatprep.subr.bf16.mxu0 0
  %1421 = vmatpush1.bf16.msra.mxu0 0
  %1422 = vmatprep.subr.bf16.mxu0 0
  %1423 = vmatpush1.bf16.msra.mxu0 0
  %1424 = vmatprep.mubr.bf16.mxu0 0
  %1425 = vmatmul.mubr.bf16.gmra.mrb[0].mxu0 %v1349
  %v1426 = vpop.f32.mrb[0].mxu0
  %v1427 = vadd.f32 %v1386, %v1426
  %v1428 = vpop.f32.mrb[0].mxu0
  %v1429 = vadd.f32 %v1388, %v1428
  %v1430 = vpop.f32.mrb[0].mxu0
  %v1431 = vpop.f32.mrb[0].mxu0
  %1432 = vdwg.mxu0
  %1433 = vmatprep.subr.bf16.mxu0 %v1252
  %1434 = vmatpush1.bf16.msra.mxu0 %v1251
  %1435 = vmatprep.subr.bf16.mxu0 %v1256
  %1436 = vmatpush1.bf16.msra.mxu0 %v1255
  %1437 = vmatprep.subr.bf16.mxu0 %v1260
  %1438 = vmatpush1.bf16.msra.mxu0 %v1259
  %1439 = vmatprep.subr.bf16.mxu0 %v1264
  %1440 = vmatpush1.bf16.msra.mxu0 %v1263
  %1441 = vmatprep.subr.bf16.mxu0 %v1268
  %1442 = vmatpush1.bf16.msra.mxu0 %v1267
  %1443 = vmatprep.subr.bf16.mxu0 %v1272
  %1444 = vmatpush1.bf16.msra.mxu0 %v1271
  %1445 = vmatprep.subr.bf16.mxu0 %v1276
  %1446 = vmatpush1.bf16.msra.mxu0 %v1275
  %1447 = vmatprep.subr.bf16.mxu0 %v1280
  %1448 = vmatpush1.bf16.msra.mxu0 %v1279
  %1449 = vmatprep.subr.bf16.mxu0 %v1284
  %1450 = vmatpush1.bf16.msra.mxu0 %v1283
  %1451 = vmatprep.subr.bf16.mxu0 %v1288
  %1452 = vmatpush1.bf16.msra.mxu0 %v1287
  %1453 = vmatprep.subr.bf16.mxu0 %v1292
  %1454 = vmatpush1.bf16.msra.mxu0 %v1291
  %1455 = vmatprep.subr.bf16.mxu0 %v1296
  %1456 = vmatpush1.bf16.msra.mxu0 %v1295
  %1457 = vmatprep.subr.bf16.mxu0 %v1300
  %1458 = vmatpush1.bf16.msra.mxu0 %v1299
  %1459 = vmatprep.subr.bf16.mxu0 %v1304
  %1460 = vmatpush1.bf16.msra.mxu0 %v1303
  %1461 = vmatprep.subr.bf16.mxu0 %v1308
  %1462 = vmatpush1.bf16.msra.mxu0 %v1307
  %1463 = vmatprep.subr.bf16.mxu0 %v1312
  %1464 = vmatpush1.bf16.msra.mxu0 %v1311
  %1465 = vmatprep.mubr.bf16.mxu0 %v1344
  %1466 = vmatmul.mubr.bf16.gmra.mrb[0].mxu0 %v1336
  %v1467 = vpop.f32.mrb[0].mxu0
  %v1468 = vadd.f32 %v1326, %v1467
  %v1469 = vpop.f32.mrb[0].mxu0
  %v1470 = vadd.f32 %v1326, %v1469
  %v1471 = vpop.f32.mrb[0].mxu0
  %v1472 = vpop.f32.mrb[0].mxu0
  %1473 = vdwg.mxu0
  %1474 = vmatprep.subr.bf16.mxu0 %v1316
  %1475 = vmatpush1.bf16.msra.mxu0 %v1315
  %1476 = vmatprep.subr.bf16.mxu0 %v1320
  %1477 = vmatpush1.bf16.msra.mxu0 %v1319
  %1478 = vmatprep.subr.bf16.mxu0 0
  %1479 = vmatpush1.bf16.msra.mxu0 0
  %1480 = vmatprep.subr.bf16.mxu0 0
  %1481 = vmatpush1.bf16.msra.mxu0 0
  %1482 = vmatprep.subr.bf16.mxu0 0
  %1483 = vmatpush1.bf16.msra.mxu0 0
  %1484 = vmatprep.subr.bf16.mxu0 0
  %1485 = vmatpush1.bf16.msra.mxu0 0
  %1486 = vmatprep.subr.bf16.mxu0 0
  %1487 = vmatpush1.bf16.msra.mxu0 0
  %1488 = vmatprep.subr.bf16.mxu0 0
  %1489 = vmatpush1.bf16.msra.mxu0 0
  %1490 = vmatprep.subr.bf16.mxu0 0
  %1491 = vmatpush1.bf16.msra.mxu0 0
  %1492 = vmatprep.subr.bf16.mxu0 0
  %1493 = vmatpush1.bf16.msra.mxu0 0
  %1494 = vmatprep.subr.bf16.mxu0 0
  %1495 = vmatpush1.bf16.msra.mxu0 0
  %1496 = vmatprep.subr.bf16.mxu0 0
  %1497 = vmatpush1.bf16.msra.mxu0 0
  %1498 = vmatprep.subr.bf16.mxu0 0
  %1499 = vmatpush1.bf16.msra.mxu0 0
  %1500 = vmatprep.subr.bf16.mxu0 0
  %1501 = vmatpush1.bf16.msra.mxu0 0
  %1502 = vmatprep.subr.bf16.mxu0 0
  %1503 = vmatpush1.bf16.msra.mxu0 0
  %1504 = vmatprep.subr.bf16.mxu0 0
  %1505 = vmatpush1.bf16.msra.mxu0 0
  %1506 = vmatprep.mubr.bf16.mxu0 0
  %1507 = vmatmul.mubr.bf16.gmra.mrb[0].mxu0 %v1349
  %v1508 = vpop.f32.mrb[0].mxu0
  %v1509 = vadd.f32 %v1468, %v1508
  %v1510 = vpop.f32.mrb[0].mxu0
  %v1511 = vadd.f32 %v1470, %v1510
  %v1512 = vpop.f32.mrb[0].mxu0
  %v1513 = vpop.f32.mrb[0].mxu0
  %1514 = vdwg.mxu0
  %v1515 = vtanh.pop %v1427
  %v1516 = vtanh.pop %v1429
  %v1517 = vtanh.pop %v1509
  %v1518 = vtanh.pop %v1511
  %v1519 = vmul.f32 %v1515, %v114
  %v1520 = vmul.f32 %v1516, %v118
  %v1521 = vmul.f32 %v1517, %v122
  %v1522 = vmul.f32 %v1518, %v126
  %v1527 = vcombine.low %v1519, %v1520
  %v1528 = vcombine.low %v1521, %v1522
  %v1531 = vadd.f32 %v51, %v1527
  %v1532 = vadd.f32 %v52, %v1528
  %1533 = vst [vmem:[%s7] sm:$0x77] %v1531
  %1534 = vst [vmem:[%s7 + $0x8] sm:$0x77] %v1532
  // Predicated region
  $region26: #{peipnet_inference.1} parent=0 // pred_check
    _
  $region27: #{peipnet_inference.1} parent=0 // pred_check_branch
    %1536 = sbr.rel (0) target = $region29
  $region28: #{peipnet_inference.1} parent=0 // pred_region
    _
  $region29: #{peipnet_inference.1} parent=0 // pred_fallthru
    _
  // Predicated region
  $region30: #{peipnet_inference.1} parent=0 // pred_check
    _
  $region31: #{peipnet_inference.1} parent=0 // pred_check_branch
    %1538 = sbr.rel (0) target = $region33
  $region32: #{peipnet_inference.1} parent=0 // pred_region
    _
  $region33: #{peipnet_inference.1} parent=0 // pred_fallthru
    _
  // Predicated region
  $region34: #{peipnet_inference.1} parent=0 // pred_check
    _
  $region35: #{peipnet_inference.1} parent=0 // pred_check_branch
    %1540 = sbr.rel (0) target = $region37
  $region36: #{peipnet_inference.1} parent=0 // pred_region
    _
  $region37: #{peipnet_inference.1} parent=0 // pred_fallthru
    _
  // Predicated region
  $region38: #{peipnet_inference.1} parent=0 // pred_check
    _
  $region39: #{peipnet_inference.1} parent=0 // pred_check_branch
    %1542 = sbr.rel (0) target = $region41
  $region40: #{peipnet_inference.1} parent=0 // pred_region
    _
  $region41: #{peipnet_inference.1} parent=0 // pred_fallthru
    _

</llo_original>
